<compile_context>
chip_gen: v7x
topology: tpu7x:2x2x1
jax: 0.10.0
libtpu: 0.0.40
codegen_flags: <defaults>
</compile_context>

<pallas_src>
import jax
import jax.numpy as jnp
from jax.experimental import pallas as pl
from jax.experimental.pallas import tpu as pltpu


def _round_up(n, m):
    return ((n + m - 1) // m) * m


def _pad2(a, rows, cols, dtype):
    out = jnp.zeros((rows, cols), dtype)
    return out.at[: a.shape[0], : a.shape[1]].set(a.astype(dtype))


def cnn_encoder_kernel(x_ref, w1_ref, b1_ref, wmu_ref, bmu_ref, wlv_ref, blv_ref,
                       mu_ref, std_ref):
    # enc1 + ReLU: bf16 operands on the MXU, explicit f32 accumulation, f32 epilogue.
    h = jnp.dot(x_ref[...], w1_ref[...], preferred_element_type=jnp.float32)
    h = jnp.maximum(h + b1_ref[...], 0.0)
    h = h.astype(wmu_ref.dtype)  # single cast feeding both enc2 dots
    # enc2, already split into mu / logvar halves -> lane-dense writes, no column slice.
    mu = jnp.dot(h, wmu_ref[...], preferred_element_type=jnp.float32) + bmu_ref[...]
    lv = jnp.dot(h, wlv_ref[...], preferred_element_type=jnp.float32) + blv_ref[...]
    mu_ref[...] = mu.astype(mu_ref.dtype)
    std_ref[...] = jnp.exp(lv * 0.5).astype(std_ref.dtype)  # EUP exp in f32


def cnn_encoder_forward(x, params, *, tile_b=None, matmul_dtype=jnp.bfloat16):
    """Fused forward pass.

    x: (B, D) float32
    params: w1 (D, H), b1 (1, H), w2 (H, 2M), b2 (1, 2M)   [weights pre-transposed]
    returns: (mu, std), each (B, M) float32.
    """
    B, D = x.shape
    H = params["w1"].shape[1]
    M = params["w2"].shape[1] // 2
    f32 = jnp.float32

    # Lane-dense padded feature dims (multiples of 128).
    Dp, Hp, Mp = _round_up(D, 128), _round_up(H, 128), _round_up(M, 128)

    # Batch tile: multiple of 16 sublanes (bf16-safe), capped for VMEM; multi-step grid
    # for real batch sizes so the pipeline / v7x dual-TC actually engage.
    if tile_b is None:
        tile_b = min(_round_up(B, 16), 256)
    assert tile_b % 8 == 0, "tile_b must be a multiple of 8 (sublane constraint)"
    Bp = _round_up(B, tile_b)
    grid = (Bp // tile_b,)

    # Pad inputs / weights; zero rows/cols contribute exactly 0 through linear+ReLU+linear.
    x_p = _pad2(x, Bp, Dp, matmul_dtype)
    w1_p = _pad2(params["w1"], Dp, Hp, matmul_dtype)
    b1_p = _pad2(params["b1"], 1, Hp, f32)
    w_mu = _pad2(params["w2"][:, :M], Hp, Mp, matmul_dtype)
    w_lv = _pad2(params["w2"][:, M:], Hp, Mp, matmul_dtype)
    b_mu = _pad2(params["b2"][:, :M], 1, Mp, f32)
    b_lv = _pad2(params["b2"][:, M:], 1, Mp, f32)

    # VMEM budget: weights + I/O tiles are double-buffered by the auto-pipeline.
    bpe = jnp.dtype(matmul_dtype).itemsize
    weight_bytes = (w1_p.size + w_mu.size + w_lv.size) * bpe \
        + (b1_p.size + b_mu.size + b_lv.size) * 4
    io_bytes = tile_b * Dp * bpe + 2 * tile_b * Mp * 4
    live_bytes = tile_b * Hp * 4 + 2 * tile_b * Mp * 4
    vmem_needed = 2 * (weight_bytes + io_bytes) + live_bytes
    vmem_limit = int(min(max(2 * vmem_needed, 32 * 2 ** 20), 64 * 2 ** 20))

    cost = pl.CostEstimate(
        flops=2 * Bp * (Dp * Hp + 2 * Hp * Mp),
        transcendentals=Bp * Mp,
        bytes_accessed=int(x_p.nbytes + w1_p.nbytes + w_mu.nbytes + w_lv.nbytes
                           + b1_p.nbytes + b_mu.nbytes + b_lv.nbytes
                           + 2 * Bp * Mp * 4),
    )

    rep = lambda shape: pl.BlockSpec(shape, lambda i: (0, 0))  # replicated weights/biases

    mu_p, std_p = pl.pallas_call(
        cnn_encoder_kernel,
        out_shape=(
            jax.ShapeDtypeStruct((Bp, Mp), f32),
            jax.ShapeDtypeStruct((Bp, Mp), f32),
        ),
        grid_spec=pltpu.PrefetchScalarGridSpec(
            num_scalar_prefetch=0,
            grid=grid,
            in_specs=[
                pl.BlockSpec((tile_b, Dp), lambda i: (i, 0)),   # x tile
                rep((Dp, Hp)), rep((1, Hp)),                    # enc1
                rep((Hp, Mp)), rep((1, Mp)),                    # enc2 mu half
                rep((Hp, Mp)), rep((1, Mp)),                    # enc2 logvar half
            ],
            out_specs=[
                pl.BlockSpec((tile_b, Mp), lambda i: (i, 0)),   # mu  (lane-dense)
                pl.BlockSpec((tile_b, Mp), lambda i: (i, 0)),   # std (lane-dense)
            ],
        ),
        compiler_params=pltpu.CompilerParams(
            dimension_semantics=("parallel",),
            vmem_limit_bytes=vmem_limit,
        ),
        cost_estimate=cost,
    )(x_p, w1_p, b1_p, w_mu, b_mu, w_lv, b_lv)

    return mu_p[:B, :M], std_p[:B, :M]


def init_cnn_encoder_params(key, D, H, M):
    """nn.Linear-style init (uniform +-1/sqrt(fan_in)); weights stored as (in, out)."""
    ks = jax.random.split(key, 4)

    def linear(kw, kb, fan_in, fan_out):
        bound = 1.0 / (fan_in ** 0.5)
        w = jax.random.uniform(kw, (fan_in, fan_out), jnp.float32, -bound, bound)
        b = jax.random.uniform(kb, (1, fan_out), jnp.float32, -bound, bound)
        return w, b

    w1, b1 = linear(ks[0], ks[1], D, H)
    w2, b2 = linear(ks[2], ks[3], H, 2 * M)
    return {"w1": w1, "b1": b1, "w2": w2, "b2": b2}


def cnn_encoder_ref(x, p, matmul_dtype=jnp.float32):
    """Pure-JAX reference matching the PyTorch forward.

    matmul_dtype=bfloat16 emulates the kernel's bf16-operand / f32-accumulate matmuls.
    """
    def mm(a, w):
        return jnp.dot(a.astype(matmul_dtype), w.astype(matmul_dtype),
                       preferred_element_type=jnp.float32)

    h = jnp.maximum(mm(x, p["w1"]) + p["b1"], 0.0)
    y = mm(h, p["w2"]) + p["b2"]
    M = p["w2"].shape[1] // 2
    mu = y[:, :M]
    std = jnp.exp(y[:, M:] / 2.0)
    return mu, std


if __name__ == "__main__":
    # Small shapes consistent with the module's forward (x is (B, D)); B chosen so the
    # default tile_b=256 yields a 2-step "parallel" grid.
    B, D, H, M = 512, 32, 64, 16
    key = jax.random.PRNGKey(0)
    k_x, k_p = jax.random.split(key)
    x = jax.random.normal(k_x, (B, D), jnp.float32)
    params = init_cnn_encoder_params(k_p, D, H, M)

    mu, std = cnn_encoder_forward(x, params)
    jax.block_until_ready((mu, std))
    assert mu.shape == (B, M) and std.shape == (B, M)

    # Tight check vs. a reference using the same bf16-operand / f32-accumulate matmuls.
    mu_bf, std_bf = cnn_encoder_ref(x, params, matmul_dtype=jnp.bfloat16)
    assert jnp.allclose(mu, mu_bf, atol=2e-3, rtol=2e-3)
    assert jnp.allclose(std, std_bf, atol=2e-3, rtol=2e-3)

    # Sanity check vs. the full-f32 PyTorch semantics (difference = bf16 operand rounding).
    mu_f32, std_f32 = cnn_encoder_ref(x, params, matmul_dtype=jnp.float32)
    assert jnp.allclose(mu, mu_f32, atol=3e-2, rtol=3e-2)
    assert jnp.allclose(std, std_f32, atol=3e-2, rtol=3e-2)

    print("KERNEL_OK")
</pallas_src>

<mosaic_0001>
module attributes {stable_mosaic.version = 11 : i64} {
  func.func @cnn_encoder_kernel(%arg0: i32, %arg1: memref<256x128xbf16, #tpu.memory_space<vmem>>, %arg2: memref<128x128xbf16, #tpu.memory_space<vmem>>, %arg3: memref<1x128xf32, #tpu.memory_space<vmem>>, %arg4: memref<128x128xbf16, #tpu.memory_space<vmem>>, %arg5: memref<1x128xf32, #tpu.memory_space<vmem>>, %arg6: memref<128x128xbf16, #tpu.memory_space<vmem>>, %arg7: memref<1x128xf32, #tpu.memory_space<vmem>>, %arg8: memref<256x128xf32, #tpu.memory_space<vmem>>, %arg9: memref<256x128xf32, #tpu.memory_space<vmem>>) attributes {dimension_semantics = [#tpu.dimension_semantics<parallel>], iteration_bounds = array<i64: 2>, scalar_prefetch = 0 : i64, scratch_operands = 0 : i64, tpu.core_type = #tpu.core_type<tc>, window_params = [{transform_indices = @transform_0, window_bounds = array<i64: 256, 128>}, {pipeline_mode = #tpu.pipeline_mode<synchronous>, transform_indices = @transform_1, window_bounds = array<i64: 128, 128>}, {pipeline_mode = #tpu.pipeline_mode<synchronous>, transform_indices = @transform_2, window_bounds = array<i64: 1, 128>}, {pipeline_mode = #tpu.pipeline_mode<synchronous>, transform_indices = @transform_3, window_bounds = array<i64: 128, 128>}, {pipeline_mode = #tpu.pipeline_mode<synchronous>, transform_indices = @transform_4, window_bounds = array<i64: 1, 128>}, {pipeline_mode = #tpu.pipeline_mode<synchronous>, transform_indices = @transform_5, window_bounds = array<i64: 128, 128>}, {pipeline_mode = #tpu.pipeline_mode<synchronous>, transform_indices = @transform_6, window_bounds = array<i64: 1, 128>}, {transform_indices = @transform_7, window_bounds = array<i64: 256, 128>}, {transform_indices = @transform_8, window_bounds = array<i64: 256, 128>}]} {
    %c0 = arith.constant 0 : index
    %c0_0 = arith.constant 0 : index
    %0 = vector.load %arg1[%c0, %c0_0] : memref<256x128xbf16, #tpu.memory_space<vmem>>, vector<256x128xbf16>
    %c0_1 = arith.constant 0 : index
    %c0_2 = arith.constant 0 : index
    %1 = vector.load %arg2[%c0_1, %c0_2] : memref<128x128xbf16, #tpu.memory_space<vmem>>, vector<128x128xbf16>
    %cst = arith.constant dense<0.000000e+00> : vector<256x128xf32>
    %2 = tpu.matmul %0, %1, %cst {dimension_numbers = #tpu.dot_dimension_numbers<[1], [0], [0], [1], [0, 0, 1, 1], [], []>} : vector<256x128xbf16>, vector<128x128xbf16>, vector<256x128xf32> -> vector<256x128xf32>
    %c0_3 = arith.constant 0 : index
    %c0_4 = arith.constant 0 : index
    %3 = vector.load %arg3[%c0_3, %c0_4] : memref<1x128xf32, #tpu.memory_space<vmem>>, vector<1x128xf32>
    %4 = vector.broadcast %3 : vector<1x128xf32> to vector<256x128xf32>
    %5 = arith.addf %2, %4 : vector<256x128xf32>
    %cst_5 = arith.constant 0.000000e+00 : f32
    %6 = vector.broadcast %cst_5 : f32 to vector<256x128xf32>
    %7 = arith.maximumf %5, %6 : vector<256x128xf32>
    %8 = arith.truncf %7 : vector<256x128xf32> to vector<256x128xbf16>
    %c0_6 = arith.constant 0 : index
    %c0_7 = arith.constant 0 : index
    %9 = vector.load %arg4[%c0_6, %c0_7] : memref<128x128xbf16, #tpu.memory_space<vmem>>, vector<128x128xbf16>
    %cst_8 = arith.constant dense<0.000000e+00> : vector<256x128xf32>
    %10 = tpu.matmul %8, %9, %cst_8 {dimension_numbers = #tpu.dot_dimension_numbers<[1], [0], [0], [1], [0, 0, 1, 1], [], []>} : vector<256x128xbf16>, vector<128x128xbf16>, vector<256x128xf32> -> vector<256x128xf32>
    %c0_9 = arith.constant 0 : index
    %c0_10 = arith.constant 0 : index
    %11 = vector.load %arg5[%c0_9, %c0_10] : memref<1x128xf32, #tpu.memory_space<vmem>>, vector<1x128xf32>
    %12 = vector.broadcast %11 : vector<1x128xf32> to vector<256x128xf32>
    %13 = arith.addf %10, %12 : vector<256x128xf32>
    %c0_11 = arith.constant 0 : index
    %c0_12 = arith.constant 0 : index
    %14 = vector.load %arg6[%c0_11, %c0_12] : memref<128x128xbf16, #tpu.memory_space<vmem>>, vector<128x128xbf16>
    %cst_13 = arith.constant dense<0.000000e+00> : vector<256x128xf32>
    %15 = tpu.matmul %8, %14, %cst_13 {dimension_numbers = #tpu.dot_dimension_numbers<[1], [0], [0], [1], [0, 0, 1, 1], [], []>} : vector<256x128xbf16>, vector<128x128xbf16>, vector<256x128xf32> -> vector<256x128xf32>
    %c0_14 = arith.constant 0 : index
    %c0_15 = arith.constant 0 : index
    %16 = vector.load %arg7[%c0_14, %c0_15] : memref<1x128xf32, #tpu.memory_space<vmem>>, vector<1x128xf32>
    %17 = vector.broadcast %16 : vector<1x128xf32> to vector<256x128xf32>
    %18 = arith.addf %15, %17 : vector<256x128xf32>
    %c0_16 = arith.constant 0 : index
    %c0_17 = arith.constant 0 : index
    %19 = vector.load %arg8[%c0_16, %c0_17] : memref<256x128xf32, #tpu.memory_space<vmem>>, vector<256x128xf32>
    tpu.vector_store %arg8[%c0_16, %c0_17], %13 {strides = array<i32>} : memref<256x128xf32, #tpu.memory_space<vmem>>, vector<256x128xf32>,
    %cst_18 = arith.constant 5.000000e-01 : f32
    %20 = vector.broadcast %cst_18 : f32 to vector<256x128xf32>
    %21 = arith.mulf %18, %20 : vector<256x128xf32>
    %22 = math.exp %21 : vector<256x128xf32>
    %c0_19 = arith.constant 0 : index
    %c0_20 = arith.constant 0 : index
    %23 = vector.load %arg9[%c0_19, %c0_20] : memref<256x128xf32, #tpu.memory_space<vmem>>, vector<256x128xf32>
    tpu.vector_store %arg9[%c0_19, %c0_20], %22 {strides = array<i32>} : memref<256x128xf32, #tpu.memory_space<vmem>>, vector<256x128xf32>,
    return
  }
  func.func @transform_0(%arg0: i32) -> (i32, i32) {
    %c0_i32 = arith.constant 0 : i32
    %c0_i32_0 = arith.constant 0 : i32
    return %arg0, %c0_i32 : i32, i32
  }
  func.func @transform_1(%arg0: i32) -> (i32, i32) {
    %c0_i32 = arith.constant 0 : i32
    %c0_i32_0 = arith.constant 0 : i32
    %c0_i32_1 = arith.constant 0 : i32
    return %c0_i32, %c0_i32_0 : i32, i32
  }
  func.func @transform_2(%arg0: i32) -> (i32, i32) {
    %c0_i32 = arith.constant 0 : i32
    %c0_i32_0 = arith.constant 0 : i32
    %c0_i32_1 = arith.constant 0 : i32
    return %c0_i32, %c0_i32_0 : i32, i32
  }
  func.func @transform_3(%arg0: i32) -> (i32, i32) {
    %c0_i32 = arith.constant 0 : i32
    %c0_i32_0 = arith.constant 0 : i32
    %c0_i32_1 = arith.constant 0 : i32
    return %c0_i32, %c0_i32_0 : i32, i32
  }
  func.func @transform_4(%arg0: i32) -> (i32, i32) {
    %c0_i32 = arith.constant 0 : i32
    %c0_i32_0 = arith.constant 0 : i32
    %c0_i32_1 = arith.constant 0 : i32
    return %c0_i32, %c0_i32_0 : i32, i32
  }
  func.func @transform_5(%arg0: i32) -> (i32, i32) {
    %c0_i32 = arith.constant 0 : i32
    %c0_i32_0 = arith.constant 0 : i32
    %c0_i32_1 = arith.constant 0 : i32
    return %c0_i32, %c0_i32_0 : i32, i32
  }
  func.func @transform_6(%arg0: i32) -> (i32, i32) {
    %c0_i32 = arith.constant 0 : i32
    %c0_i32_0 = arith.constant 0 : i32
    %c0_i32_1 = arith.constant 0 : i32
    return %c0_i32, %c0_i32_0 : i32, i32
  }
  func.func @transform_7(%arg0: i32) -> (i32, i32) {
    %c0_i32 = arith.constant 0 : i32
    %c0_i32_0 = arith.constant 0 : i32
    return %arg0, %c0_i32 : i32, i32
  }
  func.func @transform_8(%arg0: i32) -> (i32, i32) {
    %c0_i32 = arith.constant 0 : i32
    %c0_i32_0 = arith.constant 0 : i32
    return %arg0, %c0_i32 : i32, i32
  }
}

</mosaic_0001>

<llo_original>
// kernel: tpu_custom_call.1
$region0: #{tpu_custom_call.1}
  #allocation0 [shape = 'u32[]', space=smem, size = 0x4, offset = 0x4, fixed_abs, tag = 'smem constant byte address 0x4 - core index']
  #allocation1 [shape = 'u32[144,128]{1,0:T(1,128)}', space=vmem, size = 0x12000, scoped, tag = 'internal scratch']
  %s0 = inlined_call_operand.hbm [shape: bf16[512,128], index: 0, kind: input, shape index: {}]
  %s1 = inlined_call_operand.hbm [shape: bf16[128,128], index: 1, kind: input, shape index: {}]
  %s2 = inlined_call_operand.vmem [shape: f32[1,128], index: 2, kind: input, shape index: {}]
  %s3 = inlined_call_operand.hbm [shape: bf16[128,128], index: 3, kind: input, shape index: {}]
  %s4 = inlined_call_operand.vmem [shape: f32[1,128], index: 4, kind: input, shape index: {}]
  %s5 = inlined_call_operand.hbm [shape: bf16[128,128], index: 5, kind: input, shape index: {}]
  %s6 = inlined_call_operand.vmem [shape: f32[1,128], index: 6, kind: input, shape index: {}]
  %s7 = inlined_call_operand.hbm [shape: f32[512,128], index: 7, kind: output, shape index: {0}]
  %s8 = inlined_call_operand.hbm [shape: f32[512,128], index: 8, kind: output, shape index: {1}]
  %9 = xla_tuple %s7, %s8
  %s10 = sld [smem:[#allocation0]]
  $region85: #{tpu_custom_call.1} parent=0
    _
  %s12 = ssub.s32 1, %s10
  %s13 = scalar_select 0, %s12, %s10
  $region1: #{tpu_custom_call.1} parent=0
    #allocation2 [shape = 'u8[131072]{0}', space=vmem, size = 0x20000, scoped, tag = 'input window, operand 0']
    #allocation3 [shape = 's32[2]{0}', space=sflag, size = 0x8, scoped, tag = 'scoped memory for tpu_custom_call.1']
    #allocation4 [shape = 's32[2]{0}', space=sflag, size = 0x8, scoped, tag = 'scoped memory for tpu_custom_call.1']
    #allocation5 [shape = 'u8[32768]{0}', space=vmem, size = 0x8000, scoped, tag = 'input window, operand 1, single buffered']
    #allocation6 [shape = 's32[1]{0}', space=sflag, size = 0x4, scoped, tag = 'scoped memory for tpu_custom_call.1']
    #allocation7 [shape = 'u8[32768]{0}', space=vmem, size = 0x8000, scoped, tag = 'input window, operand 3, single buffered']
    #allocation8 [shape = 'u8[32768]{0}', space=vmem, size = 0x8000, scoped, tag = 'input window, operand 5, single buffered']
    #allocation9 [shape = 's32[1]{0}', space=sflag, size = 0x4, scoped, tag = 'scoped memory for tpu_custom_call.1']
    #allocation10 [shape = 'u8[262144]{0}', space=vmem, size = 0x40000, scoped, tag = 'output window, operand 0']
    #allocation11 [shape = 'u8[262144]{0}', space=vmem, size = 0x40000, scoped, tag = 'output window, operand 1']
    #allocation12 [shape = 's32[2]{0}', space=sflag, size = 0x8, scoped, tag = 'scoped memory for tpu_custom_call.1']
    %14 = vsyncpa [#allocation3], 0
    %s15 = scalar_lea.sflag [#allocation3], 1
    %16 = vsyncpa %s15, 0
    %17 = vsyncpa [#allocation6], 0
    %18 = vsyncpa [#allocation9], 0
    %19 = vsyncpa [#allocation4], 0
    %s20 = scalar_lea.sflag [#allocation4], 1
    %21 = vsyncpa %s20, 0
    %22 = vsyncpa [#allocation12], 0
    %s23 = scalar_lea.sflag [#allocation12], 1
    %24 = vsyncpa %s23, 0
    loop: start=0, step=1, limit=4
    $region2: #{tpu_custom_call.1} parent=1 // loop_pre_header
      _
    $region3: #{tpu_custom_call.1} parent=1 // loop_header
      %s26 = sphi 0, %s30
      %p27 = scmp.ge.s32.totalorder %s26, 4
      %s36 = sphi 0, %s38
      %s39 = sphi 0, %s36
      %s40 = sphi 0, %s39
      %s56 = sphi 0, %s40
      %s60 = sphi 0, %s60
      %s62 = sphi 0, %s60
      %s63 = sphi 0, %s62
      %s77 = sphi 0, %s63
      %s81 = sphi 0, %s81
      %s83 = sphi 0, %s81
      %s84 = sphi 0, %s83
      %s98 = sphi 0, %s84
      %s102 = sphi 0, %s102
      %s104 = sphi 0, %s102
      %s105 = sphi 0, %s104
      %s119 = sphi 0, %s105
      %s123 = sphi 0, %s123
      %s125 = sphi 0, %s123
      %s126 = sphi 0, %s125
      %s140 = sphi 0, %s126
      %s144 = sphi 0, %s144
      %s146 = sphi 0, %s144
      %s147 = sphi 0, %s146
      %s161 = sphi 0, %s147
      %s165 = sphi 0, %s165
      %s167 = sphi 0, %s165
      %s168 = sphi 0, %s167
      %s182 = sphi 0, %s168
      %s188 = sphi 0, %s190
      %s191 = sphi 0, %s188
      %s192 = sphi 0, %s191
      %s208 = sphi 0, %s192
      %s214 = sphi 0, %s216
      %s217 = sphi 0, %s214
      %s218 = sphi 0, %s217
      %s234 = sphi 0, %s218
    $region4: #{tpu_custom_call.1} parent=1 // loop_header_branch
      %29 = sbr.rel (%p27) target = $region8
    $region5: #{tpu_custom_call.1} parent=1 // loop_body
      %s31 = ssub.s32 %s26, 1
      %s32 = ssub.s32 %s26, 2
      %s33 = sadd.s32 %s26, 1
      %s34 = ssub.s32 %s26, %s33
      %p35 = scmp.eq.s32.totalorder %s34, 0
      %s37 = sadd.s32 %s36, 1
      %s38 = scalar_select %p35, %s36, %s37
      %p41 = pneg %p35
      %p42 = scmp.eq.s32.totalorder %s26, 1
      %p43 = por %p41, %p42
      %p44 = scmp.ne.s32.totalorder %s36, %s39
      %p45 = scmp.eq.s32.totalorder %s26, 0
      %p46 = por %p44, %p45
      %p47 = scmp.ne.s32.totalorder %s36, %s39
      %p48 = scmp.eq.s32.totalorder %s31, 1
      %p49 = por %p47, %p48
      %p50 = scmp.ne.s32.totalorder %s39, %s40
      %p51 = scmp.eq.s32.totalorder %s31, 0
      %p52 = por %p50, %p51
      %p53 = scmp.ne.s32.totalorder %s39, %s40
      %p54 = scmp.eq.s32.totalorder %s32, 1
      %p55 = por %p53, %p54
      %p57 = scmp.ne.s32.totalorder %s40, %s56
      %p58 = scmp.eq.s32.totalorder %s32, 0
      %p59 = por %p57, %p58
      %s61 = sadd.s32 %s60, 1
      %p64 = scmp.eq.s32.totalorder %s26, 1
      %p65 = scmp.ne.s32.totalorder %s60, %s62
      %p66 = scmp.eq.s32.totalorder %s26, 0
      %p67 = por %p65, %p66
      %p68 = scmp.ne.s32.totalorder %s60, %s62
      %p69 = scmp.eq.s32.totalorder %s31, 1
      %p70 = por %p68, %p69
      %p71 = scmp.ne.s32.totalorder %s62, %s63
      %p72 = scmp.eq.s32.totalorder %s31, 0
      %p73 = por %p71, %p72
      %p74 = scmp.ne.s32.totalorder %s62, %s63
      %p75 = scmp.eq.s32.totalorder %s32, 1
      %p76 = por %p74, %p75
      %p78 = scmp.ne.s32.totalorder %s63, %s77
      %p79 = scmp.eq.s32.totalorder %s32, 0
      %p80 = por %p78, %p79
      %s82 = sadd.s32 %s81, 1
      %p85 = scmp.eq.s32.totalorder %s26, 1
      %p86 = scmp.ne.s32.totalorder %s81, %s83
      %p87 = scmp.eq.s32.totalorder %s26, 0
      %p88 = por %p86, %p87
      %p89 = scmp.ne.s32.totalorder %s81, %s83
      %p90 = scmp.eq.s32.totalorder %s31, 1
      %p91 = por %p89, %p90
      %p92 = scmp.ne.s32.totalorder %s83, %s84
      %p93 = scmp.eq.s32.totalorder %s31, 0
      %p94 = por %p92, %p93
      %p95 = scmp.ne.s32.totalorder %s83, %s84
      %p96 = scmp.eq.s32.totalorder %s32, 1
      %p97 = por %p95, %p96
      %p99 = scmp.ne.s32.totalorder %s84, %s98
      %p100 = scmp.eq.s32.totalorder %s32, 0
      %p101 = por %p99, %p100
      %s103 = sadd.s32 %s102, 1
      %p106 = scmp.eq.s32.totalorder %s26, 1
      %p107 = scmp.ne.s32.totalorder %s102, %s104
      %p108 = scmp.eq.s32.totalorder %s26, 0
      %p109 = por %p107, %p108
      %p110 = scmp.ne.s32.totalorder %s102, %s104
      %p111 = scmp.eq.s32.totalorder %s31, 1
      %p112 = por %p110, %p111
      %p113 = scmp.ne.s32.totalorder %s104, %s105
      %p114 = scmp.eq.s32.totalorder %s31, 0
      %p115 = por %p113, %p114
      %p116 = scmp.ne.s32.totalorder %s104, %s105
      %p117 = scmp.eq.s32.totalorder %s32, 1
      %p118 = por %p116, %p117
      %p120 = scmp.ne.s32.totalorder %s105, %s119
      %p121 = scmp.eq.s32.totalorder %s32, 0
      %p122 = por %p120, %p121
      %s124 = sadd.s32 %s123, 1
      %p127 = scmp.eq.s32.totalorder %s26, 1
      %p128 = scmp.ne.s32.totalorder %s123, %s125
      %p129 = scmp.eq.s32.totalorder %s26, 0
      %p130 = por %p128, %p129
      %p131 = scmp.ne.s32.totalorder %s123, %s125
      %p132 = scmp.eq.s32.totalorder %s31, 1
      %p133 = por %p131, %p132
      %p134 = scmp.ne.s32.totalorder %s125, %s126
      %p135 = scmp.eq.s32.totalorder %s31, 0
      %p136 = por %p134, %p135
      %p137 = scmp.ne.s32.totalorder %s125, %s126
      %p138 = scmp.eq.s32.totalorder %s32, 1
      %p139 = por %p137, %p138
      %p141 = scmp.ne.s32.totalorder %s126, %s140
      %p142 = scmp.eq.s32.totalorder %s32, 0
      %p143 = por %p141, %p142
      %s145 = sadd.s32 %s144, 1
      %p148 = scmp.eq.s32.totalorder %s26, 1
      %p149 = scmp.ne.s32.totalorder %s144, %s146
      %p150 = scmp.eq.s32.totalorder %s26, 0
      %p151 = por %p149, %p150
      %p152 = scmp.ne.s32.totalorder %s144, %s146
      %p153 = scmp.eq.s32.totalorder %s31, 1
      %p154 = por %p152, %p153
      %p155 = scmp.ne.s32.totalorder %s146, %s147
      %p156 = scmp.eq.s32.totalorder %s31, 0
      %p157 = por %p155, %p156
      %p158 = scmp.ne.s32.totalorder %s146, %s147
      %p159 = scmp.eq.s32.totalorder %s32, 1
      %p160 = por %p158, %p159
      %p162 = scmp.ne.s32.totalorder %s147, %s161
      %p163 = scmp.eq.s32.totalorder %s32, 0
      %p164 = por %p162, %p163
      %s166 = sadd.s32 %s165, 1
      %p169 = scmp.eq.s32.totalorder %s26, 1
      %p170 = scmp.ne.s32.totalorder %s165, %s167
      %p171 = scmp.eq.s32.totalorder %s26, 0
      %p172 = por %p170, %p171
      %p173 = scmp.ne.s32.totalorder %s165, %s167
      %p174 = scmp.eq.s32.totalorder %s31, 1
      %p175 = por %p173, %p174
      %p176 = scmp.ne.s32.totalorder %s167, %s168
      %p177 = scmp.eq.s32.totalorder %s31, 0
      %p178 = por %p176, %p177
      %p179 = scmp.ne.s32.totalorder %s167, %s168
      %p180 = scmp.eq.s32.totalorder %s32, 1
      %p181 = por %p179, %p180
      %p183 = scmp.ne.s32.totalorder %s168, %s182
      %p184 = scmp.eq.s32.totalorder %s32, 0
      %p185 = por %p183, %p184
      %s186 = ssub.s32 %s26, %s33
      %p187 = scmp.eq.s32.totalorder %s186, 0
      %s189 = sadd.s32 %s188, 1
      %s190 = scalar_select %p187, %s188, %s189
      %p193 = pneg %p187
      %p194 = scmp.eq.s32.totalorder %s26, 1
      %p195 = por %p193, %p194
      %p196 = scmp.ne.s32.totalorder %s188, %s191
      %p197 = scmp.eq.s32.totalorder %s26, 0
      %p198 = por %p196, %p197
      %p199 = scmp.ne.s32.totalorder %s188, %s191
      %p200 = scmp.eq.s32.totalorder %s31, 1
      %p201 = por %p199, %p200
      %p202 = scmp.ne.s32.totalorder %s191, %s192
      %p203 = scmp.eq.s32.totalorder %s31, 0
      %p204 = por %p202, %p203
      %p205 = scmp.ne.s32.totalorder %s191, %s192
      %p206 = scmp.eq.s32.totalorder %s32, 1
      %p207 = por %p205, %p206
      %p209 = scmp.ne.s32.totalorder %s192, %s208
      %p210 = scmp.eq.s32.totalorder %s32, 0
      %p211 = por %p209, %p210
      %s212 = ssub.s32 %s26, %s33
      %p213 = scmp.eq.s32.totalorder %s212, 0
      %s215 = sadd.s32 %s214, 1
      %s216 = scalar_select %p213, %s214, %s215
      %p219 = pneg %p213
      %p220 = scmp.eq.s32.totalorder %s26, 1
      %p221 = por %p219, %p220
      %p222 = scmp.ne.s32.totalorder %s214, %s217
      %p223 = scmp.eq.s32.totalorder %s26, 0
      %p224 = por %p222, %p223
      %p225 = scmp.ne.s32.totalorder %s214, %s217
      %p226 = scmp.eq.s32.totalorder %s31, 1
      %p227 = por %p225, %p226
      %p228 = scmp.ne.s32.totalorder %s217, %s218
      %p229 = scmp.eq.s32.totalorder %s31, 0
      %p230 = por %p228, %p229
      %p231 = scmp.ne.s32.totalorder %s217, %s218
      %p232 = scmp.eq.s32.totalorder %s32, 1
      %p233 = por %p231, %p232
      %p235 = scmp.ne.s32.totalorder %s218, %s234
      %p236 = scmp.eq.s32.totalorder %s32, 0
      %p237 = por %p235, %p236
      %p238 = scmp.le.s32.totalorder 1, %s26
      %p239 = scmp.lt.s32.totalorder %s26, 3
      %p240 = pnand %p238, %p239
      %p241 = pneg %p240
      // Predicated region
      $region9: #{tpu_custom_call.1} parent=5 // pred_check
        _
      $region10: #{tpu_custom_call.1} parent=5 // pred_check_branch
        %243 = sbr.rel (%p240) target = $region12
      $region11: #{tpu_custom_call.1} parent=5 // pred_region
        %s244 = ssub.s32 %s26, 1
        // Predicated region
        $region13: #{tpu_custom_call.1} parent=11 // pred_check
          %p245 = pneg %p73
        $region14: #{tpu_custom_call.1} parent=11 // pred_check_branch
          %247 = sbr.rel (%p245) target = $region16
        $region15: #{tpu_custom_call.1} parent=11 // pred_region
          %s249 = ssub.s32 1024, 1024
          %250 = vsyncadd [#allocation6], %s249
          %s251 = sshll.u32 [#allocation5], 4
          %s252 = int_to_ptr.vmem [resolvable:$true] %s251
          %257 = dma.hbm_to_vmem [thread:$0]  %s1, 1024, %s252, [#allocation6], 64, 64, 4
        $region16: #{tpu_custom_call.1} parent=11 // pred_fallthru
          _
        // Predicated region
        $region17: #{tpu_custom_call.1} parent=11 // pred_check
          %p258 = pneg %p94
        $region18: #{tpu_custom_call.1} parent=11 // pred_check_branch
          %260 = sbr.rel (%p258) target = $region20
        $region19: #{tpu_custom_call.1} parent=11 // pred_region
          _
        $region20: #{tpu_custom_call.1} parent=11 // pred_fallthru
          _
        // Predicated region
        $region21: #{tpu_custom_call.1} parent=11 // pred_check
          %p261 = pneg %p115
        $region22: #{tpu_custom_call.1} parent=11 // pred_check_branch
          %263 = sbr.rel (%p261) target = $region24
        $region23: #{tpu_custom_call.1} parent=11 // pred_region
          %s265 = ssub.s32 1024, 1024
          %266 = vsyncadd [#allocation6], %s265
          %s267 = sshll.u32 [#allocation7], 4
          %s268 = int_to_ptr.vmem [resolvable:$true] %s267
          %273 = dma.hbm_to_vmem [thread:$0]  %s3, 1024, %s268, [#allocation6], 64, 64, 4
        $region24: #{tpu_custom_call.1} parent=11 // pred_fallthru
          _
        // Predicated region
        $region25: #{tpu_custom_call.1} parent=11 // pred_check
          %p274 = pneg %p136
        $region26: #{tpu_custom_call.1} parent=11 // pred_check_branch
          %276 = sbr.rel (%p274) target = $region28
        $region27: #{tpu_custom_call.1} parent=11 // pred_region
          _
        $region28: #{tpu_custom_call.1} parent=11 // pred_fallthru
          _
        // Predicated region
        $region29: #{tpu_custom_call.1} parent=11 // pred_check
          %p277 = pneg %p157
        $region30: #{tpu_custom_call.1} parent=11 // pred_check_branch
          %279 = sbr.rel (%p277) target = $region32
        $region31: #{tpu_custom_call.1} parent=11 // pred_region
          %s281 = ssub.s32 1024, 1024
          %282 = vsyncadd [#allocation9], %s281
          %s283 = sshll.u32 [#allocation8], 4
          %s284 = int_to_ptr.vmem [resolvable:$true] %s283
          %289 = dma.hbm_to_vmem [thread:$0]  %s5, 1024, %s284, [#allocation9], 64, 64, 4
        $region32: #{tpu_custom_call.1} parent=11 // pred_fallthru
          _
        // Predicated region
        $region33: #{tpu_custom_call.1} parent=11 // pred_check
          %p290 = pneg %p178
        $region34: #{tpu_custom_call.1} parent=11 // pred_check_branch
          %292 = sbr.rel (%p290) target = $region36
        $region35: #{tpu_custom_call.1} parent=11 // pred_region
          _
        $region36: #{tpu_custom_call.1} parent=11 // pred_fallthru
          _
      $region12: #{tpu_custom_call.1} parent=5 // pred_fallthru
        _
      %p293 = scmp.lt.s32.totalorder %s26, 2
      // Predicated region
      $region37: #{tpu_custom_call.1} parent=5 // pred_check
        %p294 = pneg %p293
      $region38: #{tpu_custom_call.1} parent=5 // pred_check_branch
        %296 = sbr.rel (%p294) target = $region40
      $region39: #{tpu_custom_call.1} parent=5 // pred_region
        // Predicated region
        $region41: #{tpu_custom_call.1} parent=39 // pred_check
          %p297 = pneg %p46
        $region42: #{tpu_custom_call.1} parent=39 // pred_check_branch
          %299 = sbr.rel (%p297) target = $region44
        $region43: #{tpu_custom_call.1} parent=39 // pred_region
          %s300 = sand.u32 %s36, 1
          %s301 = scalar_lea.sflag [#allocation3], %s300
          %s302 = sand.u32 %s36, 1
          %s303 = smul.addr %s302, 128
          %s304 = scalar_lea.vmem [#allocation2], %s303
          %s305 = smul.u32 32, %s26
          %s307 = ssub.s32 2048, 2048
          %308 = vsyncadd %s301, %s307
          %s309 = smul.addr %s305, 64
          %s310 = scalar_lea.hbm %s0, %s309
          %s311 = sshll.u32 %s304, 4
          %s312 = int_to_ptr.vmem [resolvable:$true] %s311
          %317 = dma.hbm_to_vmem [thread:$0]  %s310, 2048, %s312, %s301, 64, 64, 4
        $region44: #{tpu_custom_call.1} parent=39 // pred_fallthru
          _
      $region40: #{tpu_custom_call.1} parent=5 // pred_fallthru
        _
      %p318 = scmp.le.s32.totalorder 1, %s26
      %p319 = scmp.lt.s32.totalorder %s26, 3
      %p320 = pnand %p318, %p319
      %p321 = pneg %p320
      // Predicated region
      $region45: #{tpu_custom_call.1} parent=5 // pred_check
        _
      $region46: #{tpu_custom_call.1} parent=5 // pred_check_branch
        %323 = sbr.rel (%p320) target = $region48
      $region47: #{tpu_custom_call.1} parent=5 // pred_region
        %s324 = ssub.s32 %s26, 1
        %s325 = sand.u32 %s39, 1
        %s326 = scalar_lea.sflag [#allocation3], %s325
        %s327 = sand.u32 %s39, 1
        %s328 = smul.addr %s327, 128
        %s329 = scalar_lea.vmem [#allocation2], %s328
        // Predicated region
        $region49: #{tpu_custom_call.1} parent=47 // pred_check
          %p330 = pneg %p52
        $region50: #{tpu_custom_call.1} parent=47 // pred_check_branch
          %332 = sbr.rel (%p330) target = $region52
        $region51: #{tpu_custom_call.1} parent=47 // pred_region
          %333 = dma.done %s326, 2048
        $region52: #{tpu_custom_call.1} parent=47 // pred_fallthru
          _
        // Predicated region
        $region53: #{tpu_custom_call.1} parent=47 // pred_check
          %p334 = pneg %p73
        $region54: #{tpu_custom_call.1} parent=47 // pred_check_branch
          %336 = sbr.rel (%p334) target = $region56
        $region55: #{tpu_custom_call.1} parent=47 // pred_region
          %337 = dma.done [#allocation6], 1024
        $region56: #{tpu_custom_call.1} parent=47 // pred_fallthru
          _
        // Predicated region
        $region57: #{tpu_custom_call.1} parent=47 // pred_check
          %p338 = pneg %p115
        $region58: #{tpu_custom_call.1} parent=47 // pred_check_branch
          %340 = sbr.rel (%p338) target = $region60
        $region59: #{tpu_custom_call.1} parent=47 // pred_region
          %341 = dma.done [#allocation6], 1024
        $region60: #{tpu_custom_call.1} parent=47 // pred_fallthru
          _
        // Predicated region
        $region61: #{tpu_custom_call.1} parent=47 // pred_check
          %p342 = pneg %p157
        $region62: #{tpu_custom_call.1} parent=47 // pred_check_branch
          %344 = sbr.rel (%p342) target = $region64
        $region63: #{tpu_custom_call.1} parent=47 // pred_region
          %345 = dma.done [#allocation9], 1024
        $region64: #{tpu_custom_call.1} parent=47 // pred_fallthru
          _
        %s346 = sand.u32 %s39, 1
        %s347 = scalar_lea.sflag [#allocation3], %s346
        %s348 = sand.u32 %s39, 1
        %s349 = smul.addr %s348, 128
        %s350 = scalar_lea.vmem [#allocation2], %s349
        %p351 = pneg %p52
        %p352 = pneg %p49
        %p353 = pneg %p73
        %p354 = pneg %p70
        %p355 = pneg %p94
        %p356 = pneg %p91
        %p357 = pneg %p115
        %p358 = pneg %p112
        %p359 = pneg %p136
        %p360 = pneg %p133
        %p361 = pneg %p157
        %p362 = pneg %p154
        %p363 = pneg %p178
        %p364 = pneg %p175
        %p365 = pneg %p204
        %p366 = pneg %p201
        %s367 = sand.u32 %s191, 1
        %s368 = scalar_lea.sflag [#allocation4], %s367
        %s369 = sand.u32 %s191, 1
        %s370 = smul.addr %s369, 256
        %s371 = scalar_lea.vmem [#allocation10], %s370
        %p372 = pneg %p230
        %p373 = pneg %p227
        %s374 = sand.u32 %s217, 1
        %s375 = scalar_lea.sflag [#allocation12], %s374
        %s376 = sand.u32 %s217, 1
        %s377 = smul.addr %s376, 256
        %s378 = scalar_lea.vmem [#allocation11], %s377
        %s379 = smul.u32 32, %s31
        %s380 = smul.u32 32, %s31
        %s381 = smul.u32 32, %s31
        %v383 = vld [vmem:[%s329] sm:$0xf]
        %v384 = vld [vmem:[%s329 + $0x4] sm:$0xf]
        %v385 = vld [vmem:[%s329 + $0x8] sm:$0xf]
        %v386 = vld [vmem:[%s329 + $0xc] sm:$0xf]
        %v387 = vld [vmem:[%s329 + $0x10] sm:$0xf]
        %v388 = vld [vmem:[%s329 + $0x14] sm:$0xf]
        %v389 = vld [vmem:[%s329 + $0x18] sm:$0xf]
        %v390 = vld [vmem:[%s329 + $0x1c] sm:$0xf]
        %v391 = vld [vmem:[%s329 + $0x20] sm:$0xf]
        %v392 = vld [vmem:[%s329 + $0x24] sm:$0xf]
        %v393 = vld [vmem:[%s329 + $0x28] sm:$0xf]
        %v394 = vld [vmem:[%s329 + $0x2c] sm:$0xf]
        %v395 = vld [vmem:[%s329 + $0x30] sm:$0xf]
        %v396 = vld [vmem:[%s329 + $0x34] sm:$0xf]
        %v397 = vld [vmem:[%s329 + $0x38] sm:$0xf]
        %v398 = vld [vmem:[%s329 + $0x3c] sm:$0xf]
        %v399 = vld [vmem:[%s329 + $0x40] sm:$0xf]
        %v400 = vld [vmem:[%s329 + $0x44] sm:$0xf]
        %v401 = vld [vmem:[%s329 + $0x48] sm:$0xf]
        %v402 = vld [vmem:[%s329 + $0x4c] sm:$0xf]
        %v403 = vld [vmem:[%s329 + $0x50] sm:$0xf]
        %v404 = vld [vmem:[%s329 + $0x54] sm:$0xf]
        %v405 = vld [vmem:[%s329 + $0x58] sm:$0xf]
        %v406 = vld [vmem:[%s329 + $0x5c] sm:$0xf]
        %v407 = vld [vmem:[%s329 + $0x60] sm:$0xf]
        %v408 = vld [vmem:[%s329 + $0x64] sm:$0xf]
        %v409 = vld [vmem:[%s329 + $0x68] sm:$0xf]
        %v410 = vld [vmem:[%s329 + $0x6c] sm:$0xf]
        %v411 = vld [vmem:[%s329 + $0x70] sm:$0xf]
        %v412 = vld [vmem:[%s329 + $0x74] sm:$0xf]
        %v413 = vld [vmem:[%s329 + $0x78] sm:$0xf]
        %v414 = vld [vmem:[%s329 + $0x7c] sm:$0xf]
        %v415 = vld [vmem:[#allocation5] sm:$0xf]
        %v416 = vld [vmem:[#allocation5 + $0x4] sm:$0xf]
        %v417 = vld [vmem:[#allocation5 + $0x8] sm:$0xf]
        %v418 = vld [vmem:[#allocation5 + $0xc] sm:$0xf]
        %v419 = vld [vmem:[#allocation5 + $0x10] sm:$0xf]
        %v420 = vld [vmem:[#allocation5 + $0x14] sm:$0xf]
        %v421 = vld [vmem:[#allocation5 + $0x18] sm:$0xf]
        %v422 = vld [vmem:[#allocation5 + $0x1c] sm:$0xf]
        %v423 = vld [vmem:[#allocation5 + $0x20] sm:$0xf]
        %v424 = vld [vmem:[#allocation5 + $0x24] sm:$0xf]
        %v425 = vld [vmem:[#allocation5 + $0x28] sm:$0xf]
        %v426 = vld [vmem:[#allocation5 + $0x2c] sm:$0xf]
        %v427 = vld [vmem:[#allocation5 + $0x30] sm:$0xf]
        %v428 = vld [vmem:[#allocation5 + $0x34] sm:$0xf]
        %v429 = vld [vmem:[#allocation5 + $0x38] sm:$0xf]
        %v430 = vld [vmem:[#allocation5 + $0x3c] sm:$0xf]
        %v431 = vld [vmem:[%s2] sm:$0x1]
        %v433 = vlaneseq
        %v434 = vshrl.u32 %v433, 7
        %v435 = vsub.s32 0, %v434
        %v436 = vrot.slane %v431, %v435
        %v470 = vunpack.c.l.b16 %v383
        %v471 = vunpack.c.l.b16 %v384
        %v472 = vunpack.c.l.b16 %v385
        %v473 = vunpack.c.l.b16 %v386
        %v474 = vunpack.c.l.b16 %v387
        %v475 = vunpack.c.l.b16 %v388
        %v476 = vunpack.c.l.b16 %v389
        %v477 = vunpack.c.l.b16 %v390
        %v478 = vunpack.c.l.b16 %v391
        %v479 = vunpack.c.l.b16 %v392
        %v480 = vunpack.c.l.b16 %v393
        %v481 = vunpack.c.l.b16 %v394
        %v482 = vunpack.c.l.b16 %v395
        %v483 = vunpack.c.l.b16 %v396
        %v484 = vunpack.c.l.b16 %v397
        %v485 = vunpack.c.l.b16 %v398
        %v486 = vunpack.c.l.b16 %v399
        %v487 = vunpack.c.l.b16 %v400
        %v488 = vunpack.c.l.b16 %v401
        %v489 = vunpack.c.l.b16 %v402
        %v490 = vunpack.c.l.b16 %v403
        %v491 = vunpack.c.l.b16 %v404
        %v492 = vunpack.c.l.b16 %v405
        %v493 = vunpack.c.l.b16 %v406
        %v494 = vunpack.c.l.b16 %v407
        %v495 = vunpack.c.l.b16 %v408
        %v496 = vunpack.c.l.b16 %v409
        %v497 = vunpack.c.l.b16 %v410
        %v498 = vunpack.c.l.b16 %v411
        %v499 = vunpack.c.l.b16 %v412
        %v500 = vunpack.c.l.b16 %v413
        %v501 = vunpack.c.l.b16 %v414
        %v502 = vpack.c.b16 %v471, %v470
        %v503 = vpack.c.b16 %v473, %v472
        %v504 = vpack.c.b16 %v475, %v474
        %v505 = vpack.c.b16 %v477, %v476
        %v506 = vpack.c.b16 %v479, %v478
        %v507 = vpack.c.b16 %v481, %v480
        %v508 = vpack.c.b16 %v483, %v482
        %v509 = vpack.c.b16 %v485, %v484
        %v510 = vpack.c.b16 %v487, %v486
        %v511 = vpack.c.b16 %v489, %v488
        %v512 = vpack.c.b16 %v491, %v490
        %v513 = vpack.c.b16 %v493, %v492
        %v514 = vpack.c.b16 %v495, %v494
        %v515 = vpack.c.b16 %v497, %v496
        %v516 = vpack.c.b16 %v499, %v498
        %v517 = vpack.c.b16 %v501, %v500
        %v550 = vunpack.c.l.b16 %v415
        %v551 = vunpack.c.l.b16 %v416
        %v552 = vunpack.c.l.b16 %v417
        %v553 = vunpack.c.l.b16 %v418
        %v554 = vunpack.c.l.b16 %v419
        %v555 = vunpack.c.l.b16 %v420
        %v556 = vunpack.c.l.b16 %v421
        %v557 = vunpack.c.l.b16 %v422
        %v558 = vunpack.c.l.b16 %v423
        %v559 = vunpack.c.l.b16 %v424
        %v560 = vunpack.c.l.b16 %v425
        %v561 = vunpack.c.l.b16 %v426
        %v562 = vunpack.c.l.b16 %v427
        %v563 = vunpack.c.l.b16 %v428
        %v564 = vunpack.c.l.b16 %v429
        %v565 = vunpack.c.l.b16 %v430
        %v566 = vpack.c.b16 %v551, %v550
        %v567 = vpack.c.b16 %v553, %v552
        %v568 = vpack.c.b16 %v555, %v554
        %v569 = vpack.c.b16 %v557, %v556
        %v570 = vpack.c.b16 %v559, %v558
        %v571 = vpack.c.b16 %v561, %v560
        %v572 = vpack.c.b16 %v563, %v562
        %v573 = vpack.c.b16 %v565, %v564
        %582 = vmatprep.subr.bf16.mxu0 0
        %583 = vmatpush1.bf16.msra.mxu0 %v566
        %584 = vmatprep.subr.bf16.mxu0 0
        %585 = vmatpush1.bf16.msra.mxu0 %v567
        %586 = vmatprep.subr.bf16.mxu0 0
        %587 = vmatpush1.bf16.msra.mxu0 %v568
        %588 = vmatprep.subr.bf16.mxu0 0
        %589 = vmatpush1.bf16.msra.mxu0 %v569
        %590 = vmatprep.subr.bf16.mxu0 0
        %591 = vmatpush1.bf16.msra.mxu0 %v570
        %592 = vmatprep.subr.bf16.mxu0 0
        %593 = vmatpush1.bf16.msra.mxu0 %v571
        %594 = vmatprep.subr.bf16.mxu0 0
        %595 = vmatpush1.bf16.msra.mxu0 %v572
        %596 = vmatprep.subr.bf16.mxu0 0
        %597 = vmatpush1.bf16.msra.mxu0 %v573
        %598 = vmatprep.subr.bf16.mxu0 0
        %599 = vmatpush1.bf16.msra.mxu0 0
        %600 = vmatprep.subr.bf16.mxu0 0
        %601 = vmatpush1.bf16.msra.mxu0 0
        %602 = vmatprep.subr.bf16.mxu0 0
        %603 = vmatpush1.bf16.msra.mxu0 0
        %604 = vmatprep.subr.bf16.mxu0 0
        %605 = vmatpush1.bf16.msra.mxu0 0
        %606 = vmatprep.subr.bf16.mxu0 0
        %607 = vmatpush1.bf16.msra.mxu0 0
        %608 = vmatprep.subr.bf16.mxu0 0
        %609 = vmatpush1.bf16.msra.mxu0 0
        %610 = vmatprep.subr.bf16.mxu0 0
        %611 = vmatpush1.bf16.msra.mxu0 0
        %612 = vmatprep.subr.bf16.mxu0 0
        %613 = vmatpush1.bf16.msra.mxu0 0
        %614 = vmatprep.mubr.bf16.mxu0 0
        %615 = vmatmul.mubr.bf16.gmra.mrb[0].mxu0 %v502
        %v616 = vpop.f32.mrb[0].mxu0
        %v617 = vadd.f32 %v436, %v616
        %v618 = vpop.f32.mrb[0].mxu0
        %v619 = vpop.f32.mrb[0].mxu0
        %v620 = vadd.f32 %v436, %v619
        %v621 = vpop.f32.mrb[0].mxu0
        %622 = vmatprep.mubr.bf16.mxu0 0
        %623 = vmatmul.mubr.bf16.gmra.mrb[0].mxu0 %v503
        %v624 = vpop.f32.mrb[0].mxu0
        %v625 = vadd.f32 %v436, %v624
        %v626 = vpop.f32.mrb[0].mxu0
        %v627 = vpop.f32.mrb[0].mxu0
        %v628 = vadd.f32 %v436, %v627
        %v629 = vpop.f32.mrb[0].mxu0
        %630 = vmatprep.mubr.bf16.mxu0 0
        %631 = vmatmul.mubr.bf16.gmra.mrb[0].mxu0 %v504
        %v632 = vpop.f32.mrb[0].mxu0
        %v633 = vadd.f32 %v436, %v632
        %v634 = vpop.f32.mrb[0].mxu0
        %v635 = vpop.f32.mrb[0].mxu0
        %v636 = vadd.f32 %v436, %v635
        %v637 = vpop.f32.mrb[0].mxu0
        %638 = vmatprep.mubr.bf16.mxu0 0
        %639 = vmatmul.mubr.bf16.gmra.mrb[0].mxu0 %v505
        %v640 = vpop.f32.mrb[0].mxu0
        %v641 = vadd.f32 %v436, %v640
        %v642 = vpop.f32.mrb[0].mxu0
        %v643 = vpop.f32.mrb[0].mxu0
        %v644 = vadd.f32 %v436, %v643
        %v645 = vpop.f32.mrb[0].mxu0
        %646 = vmatprep.mubr.bf16.mxu0 0
        %647 = vmatmul.mubr.bf16.gmra.mrb[0].mxu0 %v506
        %v648 = vpop.f32.mrb[0].mxu0
        %v649 = vadd.f32 %v436, %v648
        %v650 = vpop.f32.mrb[0].mxu0
        %v651 = vpop.f32.mrb[0].mxu0
        %v652 = vadd.f32 %v436, %v651
        %v653 = vpop.f32.mrb[0].mxu0
        %654 = vmatprep.mubr.bf16.mxu0 0
        %655 = vmatmul.mubr.bf16.gmra.mrb[0].mxu0 %v507
        %v656 = vpop.f32.mrb[0].mxu0
        %v657 = vadd.f32 %v436, %v656
        %v658 = vpop.f32.mrb[0].mxu0
        %v659 = vpop.f32.mrb[0].mxu0
        %v660 = vadd.f32 %v436, %v659
        %v661 = vpop.f32.mrb[0].mxu0
        %662 = vmatprep.mubr.bf16.mxu0 0
        %663 = vmatmul.mubr.bf16.gmra.mrb[0].mxu0 %v508
        %v664 = vpop.f32.mrb[0].mxu0
        %v665 = vadd.f32 %v436, %v664
        %v666 = vpop.f32.mrb[0].mxu0
        %v667 = vpop.f32.mrb[0].mxu0
        %v668 = vadd.f32 %v436, %v667
        %v669 = vpop.f32.mrb[0].mxu0
        %670 = vmatprep.mubr.bf16.mxu0 0
        %671 = vmatmul.mubr.bf16.gmra.mrb[0].mxu0 %v509
        %v672 = vpop.f32.mrb[0].mxu0
        %v673 = vadd.f32 %v436, %v672
        %v674 = vpop.f32.mrb[0].mxu0
        %v675 = vpop.f32.mrb[0].mxu0
        %v676 = vadd.f32 %v436, %v675
        %v677 = vpop.f32.mrb[0].mxu0
        %678 = vmatprep.mubr.bf16.mxu0 0
        %679 = vmatmul.mubr.bf16.gmra.mrb[0].mxu0 %v510
        %v680 = vpop.f32.mrb[0].mxu0
        %v681 = vadd.f32 %v436, %v680
        %v682 = vpop.f32.mrb[0].mxu0
        %v683 = vpop.f32.mrb[0].mxu0
        %v684 = vadd.f32 %v436, %v683
        %v685 = vpop.f32.mrb[0].mxu0
        %686 = vmatprep.mubr.bf16.mxu0 0
        %687 = vmatmul.mubr.bf16.gmra.mrb[0].mxu0 %v511
        %v688 = vpop.f32.mrb[0].mxu0
        %v689 = vadd.f32 %v436, %v688
        %v690 = vpop.f32.mrb[0].mxu0
        %v691 = vpop.f32.mrb[0].mxu0
        %v692 = vadd.f32 %v436, %v691
        %v693 = vpop.f32.mrb[0].mxu0
        %694 = vmatprep.mubr.bf16.mxu0 0
        %695 = vmatmul.mubr.bf16.gmra.mrb[0].mxu0 %v512
        %v696 = vpop.f32.mrb[0].mxu0
        %v697 = vadd.f32 %v436, %v696
        %v698 = vpop.f32.mrb[0].mxu0
        %v699 = vpop.f32.mrb[0].mxu0
        %v700 = vadd.f32 %v436, %v699
        %v701 = vpop.f32.mrb[0].mxu0
        %702 = vmatprep.mubr.bf16.mxu0 0
        %703 = vmatmul.mubr.bf16.gmra.mrb[0].mxu0 %v513
        %v704 = vpop.f32.mrb[0].mxu0
        %v705 = vadd.f32 %v436, %v704
        %v706 = vpop.f32.mrb[0].mxu0
        %v707 = vpop.f32.mrb[0].mxu0
        %v708 = vadd.f32 %v436, %v707
        %v709 = vpop.f32.mrb[0].mxu0
        %710 = vmatprep.mubr.bf16.mxu0 0
        %711 = vmatmul.mubr.bf16.gmra.mrb[0].mxu0 %v514
        %v712 = vpop.f32.mrb[0].mxu0
        %v713 = vadd.f32 %v436, %v712
        %v714 = vpop.f32.mrb[0].mxu0
        %v715 = vpop.f32.mrb[0].mxu0
        %v716 = vadd.f32 %v436, %v715
        %v717 = vpop.f32.mrb[0].mxu0
        %718 = vmatprep.mubr.bf16.mxu0 0
        %719 = vmatmul.mubr.bf16.gmra.mrb[0].mxu0 %v515
        %v720 = vpop.f32.mrb[0].mxu0
        %v721 = vadd.f32 %v436, %v720
        %v722 = vpop.f32.mrb[0].mxu0
        %v723 = vpop.f32.mrb[0].mxu0
        %v724 = vadd.f32 %v436, %v723
        %v725 = vpop.f32.mrb[0].mxu0
        %726 = vmatprep.mubr.bf16.mxu0 0
        %727 = vmatmul.mubr.bf16.gmra.mrb[0].mxu0 %v516
        %v728 = vpop.f32.mrb[0].mxu0
        %v729 = vadd.f32 %v436, %v728
        %v730 = vpop.f32.mrb[0].mxu0
        %v731 = vpop.f32.mrb[0].mxu0
        %v732 = vadd.f32 %v436, %v731
        %v733 = vpop.f32.mrb[0].mxu0
        %734 = vmatprep.mubr.bf16.mxu0 0
        %735 = vmatmul.mubr.bf16.gmra.mrb[0].mxu0 %v517
        %v736 = vpop.f32.mrb[0].mxu0
        %v737 = vadd.f32 %v436, %v736
        %v738 = vpop.f32.mrb[0].mxu0
        %v739 = vpop.f32.mrb[0].mxu0
        %v740 = vadd.f32 %v436, %v739
        %v741 = vpop.f32.mrb[0].mxu0
        %742 = vdwg.mxu0
        %v743 = vmax.f32 %v617, 0.0
        %v744 = vmax.f32 %v620, 0.0
        %v745 = vmax.f32 %v625, 0.0
        %v746 = vmax.f32 %v628, 0.0
        %v747 = vmax.f32 %v633, 0.0
        %v748 = vmax.f32 %v636, 0.0
        %v749 = vmax.f32 %v641, 0.0
        %v750 = vmax.f32 %v644, 0.0
        %v751 = vmax.f32 %v649, 0.0
        %v752 = vmax.f32 %v652, 0.0
        %v753 = vmax.f32 %v657, 0.0
        %v754 = vmax.f32 %v660, 0.0
        %v755 = vmax.f32 %v665, 0.0
        %v756 = vmax.f32 %v668, 0.0
        %v757 = vmax.f32 %v673, 0.0
        %v758 = vmax.f32 %v676, 0.0
        %v759 = vmax.f32 %v681, 0.0
        %v760 = vmax.f32 %v684, 0.0
        %v761 = vmax.f32 %v689, 0.0
        %v762 = vmax.f32 %v692, 0.0
        %v763 = vmax.f32 %v697, 0.0
        %v764 = vmax.f32 %v700, 0.0
        %v765 = vmax.f32 %v705, 0.0
        %v766 = vmax.f32 %v708, 0.0
        %v767 = vmax.f32 %v713, 0.0
        %v768 = vmax.f32 %v716, 0.0
        %v769 = vmax.f32 %v721, 0.0
        %v770 = vmax.f32 %v724, 0.0
        %v771 = vmax.f32 %v729, 0.0
        %v772 = vmax.f32 %v732, 0.0
        %v773 = vmax.f32 %v737, 0.0
        %v774 = vmax.f32 %v740, 0.0
        %v775 = vpack.c.bf16 %v744, %v743
        %v776 = vpack.c.bf16 %v746, %v745
        %v777 = vpack.c.bf16 %v748, %v747
        %v778 = vpack.c.bf16 %v750, %v749
        %v779 = vpack.c.bf16 %v752, %v751
        %v780 = vpack.c.bf16 %v754, %v753
        %v781 = vpack.c.bf16 %v756, %v755
        %v782 = vpack.c.bf16 %v758, %v757
        %v783 = vpack.c.bf16 %v760, %v759
        %v784 = vpack.c.bf16 %v762, %v761
        %v785 = vpack.c.bf16 %v764, %v763
        %v786 = vpack.c.bf16 %v766, %v765
        %v787 = vpack.c.bf16 %v768, %v767
        %v788 = vpack.c.bf16 %v770, %v769
        %v789 = vpack.c.bf16 %v772, %v771
        %v790 = vpack.c.bf16 %v774, %v773
        %v791 = vld [vmem:[#allocation7] sm:$0xf]
        %v792 = vld [vmem:[#allocation7 + $0x4] sm:$0xf]
        %v793 = vld [vmem:[#allocation7 + $0x8] sm:$0xf]
        %v794 = vld [vmem:[#allocation7 + $0xc] sm:$0xf]
        %v795 = vld [vmem:[#allocation7 + $0x10] sm:$0xf]
        %v796 = vld [vmem:[#allocation7 + $0x14] sm:$0xf]
        %v797 = vld [vmem:[#allocation7 + $0x18] sm:$0xf]
        %v798 = vld [vmem:[#allocation7 + $0x1c] sm:$0xf]
        %v799 = vld [vmem:[#allocation7 + $0x20] sm:$0xf]
        %v800 = vld [vmem:[#allocation7 + $0x24] sm:$0xf]
        %v801 = vld [vmem:[#allocation7 + $0x28] sm:$0xf]
        %v802 = vld [vmem:[#allocation7 + $0x2c] sm:$0xf]
        %v803 = vld [vmem:[#allocation7 + $0x30] sm:$0xf]
        %v804 = vld [vmem:[#allocation7 + $0x34] sm:$0xf]
        %v805 = vld [vmem:[#allocation7 + $0x38] sm:$0xf]
        %v806 = vld [vmem:[#allocation7 + $0x3c] sm:$0xf]
        %v807 = vld [vmem:[%s4] sm:$0x1]
        %v809 = vlaneseq
        %v810 = vshrl.u32 %v809, 7
        %v811 = vsub.s32 0, %v810
        %v812 = vrot.slane %v807, %v811
        %v830 = vunpack.c.l.b16 %v791
        %v831 = vunpack.c.l.b16 %v792
        %v832 = vunpack.c.l.b16 %v793
        %v833 = vunpack.c.l.b16 %v794
        %v834 = vunpack.c.l.b16 %v795
        %v835 = vunpack.c.l.b16 %v796
        %v836 = vunpack.c.l.b16 %v797
        %v837 = vunpack.c.l.b16 %v798
        %v838 = vunpack.c.l.b16 %v799
        %v839 = vunpack.c.l.b16 %v800
        %v840 = vunpack.c.l.b16 %v801
        %v841 = vunpack.c.l.b16 %v802
        %v842 = vunpack.c.l.b16 %v803
        %v843 = vunpack.c.l.b16 %v804
        %v844 = vunpack.c.l.b16 %v805
        %v845 = vunpack.c.l.b16 %v806
        %v846 = vpack.c.b16 %v831, %v830
        %v847 = vpack.c.b16 %v833, %v832
        %v848 = vpack.c.b16 %v835, %v834
        %v849 = vpack.c.b16 %v837, %v836
        %v850 = vpack.c.b16 %v839, %v838
        %v851 = vpack.c.b16 %v841, %v840
        %v852 = vpack.c.b16 %v843, %v842
        %v853 = vpack.c.b16 %v845, %v844
        %862 = vmatprep.subr.bf16.mxu0 0
        %863 = vmatpush1.bf16.msra.mxu0 %v846
        %864 = vmatprep.subr.bf16.mxu0 0
        %865 = vmatpush1.bf16.msra.mxu0 %v847
        %866 = vmatprep.subr.bf16.mxu0 0
        %867 = vmatpush1.bf16.msra.mxu0 %v848
        %868 = vmatprep.subr.bf16.mxu0 0
        %869 = vmatpush1.bf16.msra.mxu0 %v849
        %870 = vmatprep.subr.bf16.mxu0 0
        %871 = vmatpush1.bf16.msra.mxu0 %v850
        %872 = vmatprep.subr.bf16.mxu0 0
        %873 = vmatpush1.bf16.msra.mxu0 %v851
        %874 = vmatprep.subr.bf16.mxu0 0
        %875 = vmatpush1.bf16.msra.mxu0 %v852
        %876 = vmatprep.subr.bf16.mxu0 0
        %877 = vmatpush1.bf16.msra.mxu0 %v853
        %878 = vmatprep.subr.bf16.mxu0 0
        %879 = vmatpush1.bf16.msra.mxu0 0
        %880 = vmatprep.subr.bf16.mxu0 0
        %881 = vmatpush1.bf16.msra.mxu0 0
        %882 = vmatprep.subr.bf16.mxu0 0
        %883 = vmatpush1.bf16.msra.mxu0 0
        %884 = vmatprep.subr.bf16.mxu0 0
        %885 = vmatpush1.bf16.msra.mxu0 0
        %886 = vmatprep.subr.bf16.mxu0 0
        %887 = vmatpush1.bf16.msra.mxu0 0
        %888 = vmatprep.subr.bf16.mxu0 0
        %889 = vmatpush1.bf16.msra.mxu0 0
        %890 = vmatprep.subr.bf16.mxu0 0
        %891 = vmatpush1.bf16.msra.mxu0 0
        %892 = vmatprep.subr.bf16.mxu0 0
        %893 = vmatpush1.bf16.msra.mxu0 0
        %894 = vmatprep.mubr.bf16.mxu0 0
        %895 = vmatmul.mubr.bf16.gmra.mrb[0].mxu0 %v775
        %v896 = vpop.f32.mrb[0].mxu0
        %v897 = vadd.f32 %v812, %v896
        %v898 = vpop.f32.mrb[0].mxu0
        %v899 = vpop.f32.mrb[0].mxu0
        %v900 = vadd.f32 %v812, %v899
        %v901 = vpop.f32.mrb[0].mxu0
        %902 = vmatprep.mubr.bf16.mxu0 0
        %903 = vmatmul.mubr.bf16.gmra.mrb[0].mxu0 %v776
        %v904 = vpop.f32.mrb[0].mxu0
        %v905 = vadd.f32 %v812, %v904
        %v906 = vpop.f32.mrb[0].mxu0
        %v907 = vpop.f32.mrb[0].mxu0
        %v908 = vadd.f32 %v812, %v907
        %v909 = vpop.f32.mrb[0].mxu0
        %910 = vmatprep.mubr.bf16.mxu0 0
        %911 = vmatmul.mubr.bf16.gmra.mrb[0].mxu0 %v777
        %v912 = vpop.f32.mrb[0].mxu0
        %v913 = vadd.f32 %v812, %v912
        %v914 = vpop.f32.mrb[0].mxu0
        %v915 = vpop.f32.mrb[0].mxu0
        %v916 = vadd.f32 %v812, %v915
        %v917 = vpop.f32.mrb[0].mxu0
        %918 = vmatprep.mubr.bf16.mxu0 0
        %919 = vmatmul.mubr.bf16.gmra.mrb[0].mxu0 %v778
        %v920 = vpop.f32.mrb[0].mxu0
        %v921 = vadd.f32 %v812, %v920
        %v922 = vpop.f32.mrb[0].mxu0
        %v923 = vpop.f32.mrb[0].mxu0
        %v924 = vadd.f32 %v812, %v923
        %v925 = vpop.f32.mrb[0].mxu0
        %926 = vmatprep.mubr.bf16.mxu0 0
        %927 = vmatmul.mubr.bf16.gmra.mrb[0].mxu0 %v779
        %v928 = vpop.f32.mrb[0].mxu0
        %v929 = vadd.f32 %v812, %v928
        %v930 = vpop.f32.mrb[0].mxu0
        %v931 = vpop.f32.mrb[0].mxu0
        %v932 = vadd.f32 %v812, %v931
        %v933 = vpop.f32.mrb[0].mxu0
        %934 = vmatprep.mubr.bf16.mxu0 0
        %935 = vmatmul.mubr.bf16.gmra.mrb[0].mxu0 %v780
        %v936 = vpop.f32.mrb[0].mxu0
        %v937 = vadd.f32 %v812, %v936
        %v938 = vpop.f32.mrb[0].mxu0
        %v939 = vpop.f32.mrb[0].mxu0
        %v940 = vadd.f32 %v812, %v939
        %v941 = vpop.f32.mrb[0].mxu0
        %942 = vmatprep.mubr.bf16.mxu0 0
        %943 = vmatmul.mubr.bf16.gmra.mrb[0].mxu0 %v781
        %v944 = vpop.f32.mrb[0].mxu0
        %v945 = vadd.f32 %v812, %v944
        %v946 = vpop.f32.mrb[0].mxu0
        %v947 = vpop.f32.mrb[0].mxu0
        %v948 = vadd.f32 %v812, %v947
        %v949 = vpop.f32.mrb[0].mxu0
        %950 = vmatprep.mubr.bf16.mxu0 0
        %951 = vmatmul.mubr.bf16.gmra.mrb[0].mxu0 %v782
        %v952 = vpop.f32.mrb[0].mxu0
        %v953 = vadd.f32 %v812, %v952
        %v954 = vpop.f32.mrb[0].mxu0
        %v955 = vpop.f32.mrb[0].mxu0
        %v956 = vadd.f32 %v812, %v955
        %v957 = vpop.f32.mrb[0].mxu0
        %958 = vmatprep.mubr.bf16.mxu0 0
        %959 = vmatmul.mubr.bf16.gmra.mrb[0].mxu0 %v783
        %v960 = vpop.f32.mrb[0].mxu0
        %v961 = vadd.f32 %v812, %v960
        %v962 = vpop.f32.mrb[0].mxu0
        %v963 = vpop.f32.mrb[0].mxu0
        %v964 = vadd.f32 %v812, %v963
        %v965 = vpop.f32.mrb[0].mxu0
        %966 = vmatprep.mubr.bf16.mxu0 0
        %967 = vmatmul.mubr.bf16.gmra.mrb[0].mxu0 %v784
        %v968 = vpop.f32.mrb[0].mxu0
        %v969 = vadd.f32 %v812, %v968
        %v970 = vpop.f32.mrb[0].mxu0
        %v971 = vpop.f32.mrb[0].mxu0
        %v972 = vadd.f32 %v812, %v971
        %v973 = vpop.f32.mrb[0].mxu0
        %974 = vmatprep.mubr.bf16.mxu0 0
        %975 = vmatmul.mubr.bf16.gmra.mrb[0].mxu0 %v785
        %v976 = vpop.f32.mrb[0].mxu0
        %v977 = vadd.f32 %v812, %v976
        %v978 = vpop.f32.mrb[0].mxu0
        %v979 = vpop.f32.mrb[0].mxu0
        %v980 = vadd.f32 %v812, %v979
        %v981 = vpop.f32.mrb[0].mxu0
        %982 = vmatprep.mubr.bf16.mxu0 0
        %983 = vmatmul.mubr.bf16.gmra.mrb[0].mxu0 %v786
        %v984 = vpop.f32.mrb[0].mxu0
        %v985 = vadd.f32 %v812, %v984
        %v986 = vpop.f32.mrb[0].mxu0
        %v987 = vpop.f32.mrb[0].mxu0
        %v988 = vadd.f32 %v812, %v987
        %v989 = vpop.f32.mrb[0].mxu0
        %990 = vmatprep.mubr.bf16.mxu0 0
        %991 = vmatmul.mubr.bf16.gmra.mrb[0].mxu0 %v787
        %v992 = vpop.f32.mrb[0].mxu0
        %v993 = vadd.f32 %v812, %v992
        %v994 = vpop.f32.mrb[0].mxu0
        %v995 = vpop.f32.mrb[0].mxu0
        %v996 = vadd.f32 %v812, %v995
        %v997 = vpop.f32.mrb[0].mxu0
        %998 = vmatprep.mubr.bf16.mxu0 0
        %999 = vmatmul.mubr.bf16.gmra.mrb[0].mxu0 %v788
        %v1000 = vpop.f32.mrb[0].mxu0
        %v1001 = vadd.f32 %v812, %v1000
        %v1002 = vpop.f32.mrb[0].mxu0
        %v1003 = vpop.f32.mrb[0].mxu0
        %v1004 = vadd.f32 %v812, %v1003
        %v1005 = vpop.f32.mrb[0].mxu0
        %1006 = vmatprep.mubr.bf16.mxu0 0
        %1007 = vmatmul.mubr.bf16.gmra.mrb[0].mxu0 %v789
        %v1008 = vpop.f32.mrb[0].mxu0
        %v1009 = vadd.f32 %v812, %v1008
        %v1010 = vpop.f32.mrb[0].mxu0
        %v1011 = vpop.f32.mrb[0].mxu0
        %v1012 = vadd.f32 %v812, %v1011
        %v1013 = vpop.f32.mrb[0].mxu0
        %1014 = vmatprep.mubr.bf16.mxu0 0
        %1015 = vmatmul.mubr.bf16.gmra.mrb[0].mxu0 %v790
        %v1016 = vpop.f32.mrb[0].mxu0
        %v1017 = vadd.f32 %v812, %v1016
        %v1018 = vpop.f32.mrb[0].mxu0
        %v1019 = vpop.f32.mrb[0].mxu0
        %v1020 = vadd.f32 %v812, %v1019
        %v1021 = vpop.f32.mrb[0].mxu0
        %1022 = vdwg.mxu0
        %v1023 = vld [vmem:[#allocation8] sm:$0xf]
        %v1024 = vld [vmem:[#allocation8 + $0x4] sm:$0xf]
        %v1025 = vld [vmem:[#allocation8 + $0x8] sm:$0xf]
        %v1026 = vld [vmem:[#allocation8 + $0xc] sm:$0xf]
        %v1027 = vld [vmem:[#allocation8 + $0x10] sm:$0xf]
        %v1028 = vld [vmem:[#allocation8 + $0x14] sm:$0xf]
        %v1029 = vld [vmem:[#allocation8 + $0x18] sm:$0xf]
        %v1030 = vld [vmem:[#allocation8 + $0x1c] sm:$0xf]
        %v1031 = vld [vmem:[#allocation8 + $0x20] sm:$0xf]
        %v1032 = vld [vmem:[#allocation8 + $0x24] sm:$0xf]
        %v1033 = vld [vmem:[#allocation8 + $0x28] sm:$0xf]
        %v1034 = vld [vmem:[#allocation8 + $0x2c] sm:$0xf]
        %v1035 = vld [vmem:[#allocation8 + $0x30] sm:$0xf]
        %v1036 = vld [vmem:[#allocation8 + $0x34] sm:$0xf]
        %v1037 = vld [vmem:[#allocation8 + $0x38] sm:$0xf]
        %v1038 = vld [vmem:[#allocation8 + $0x3c] sm:$0xf]
        %v1039 = vld [vmem:[%s6] sm:$0x1]
        %v1041 = vlaneseq
        %v1042 = vshrl.u32 %v1041, 7
        %v1043 = vsub.s32 0, %v1042
        %v1044 = vrot.slane %v1039, %v1043
        %v1062 = vunpack.c.l.b16 %v1023
        %v1063 = vunpack.c.l.b16 %v1024
        %v1064 = vunpack.c.l.b16 %v1025
        %v1065 = vunpack.c.l.b16 %v1026
        %v1066 = vunpack.c.l.b16 %v1027
        %v1067 = vunpack.c.l.b16 %v1028
        %v1068 = vunpack.c.l.b16 %v1029
        %v1069 = vunpack.c.l.b16 %v1030
        %v1070 = vunpack.c.l.b16 %v1031
        %v1071 = vunpack.c.l.b16 %v1032
        %v1072 = vunpack.c.l.b16 %v1033
        %v1073 = vunpack.c.l.b16 %v1034
        %v1074 = vunpack.c.l.b16 %v1035
        %v1075 = vunpack.c.l.b16 %v1036
        %v1076 = vunpack.c.l.b16 %v1037
        %v1077 = vunpack.c.l.b16 %v1038
        %v1078 = vpack.c.b16 %v1063, %v1062
        %v1079 = vpack.c.b16 %v1065, %v1064
        %v1080 = vpack.c.b16 %v1067, %v1066
        %v1081 = vpack.c.b16 %v1069, %v1068
        %v1082 = vpack.c.b16 %v1071, %v1070
        %v1083 = vpack.c.b16 %v1073, %v1072
        %v1084 = vpack.c.b16 %v1075, %v1074
        %v1085 = vpack.c.b16 %v1077, %v1076
        %1094 = vmatprep.subr.bf16.mxu0 0
        %1095 = vmatpush1.bf16.msra.mxu0 %v1078
        %1096 = vmatprep.subr.bf16.mxu0 0
        %1097 = vmatpush1.bf16.msra.mxu0 %v1079
        %1098 = vmatprep.subr.bf16.mxu0 0
        %1099 = vmatpush1.bf16.msra.mxu0 %v1080
        %1100 = vmatprep.subr.bf16.mxu0 0
        %1101 = vmatpush1.bf16.msra.mxu0 %v1081
        %1102 = vmatprep.subr.bf16.mxu0 0
        %1103 = vmatpush1.bf16.msra.mxu0 %v1082
        %1104 = vmatprep.subr.bf16.mxu0 0
        %1105 = vmatpush1.bf16.msra.mxu0 %v1083
        %1106 = vmatprep.subr.bf16.mxu0 0
        %1107 = vmatpush1.bf16.msra.mxu0 %v1084
        %1108 = vmatprep.subr.bf16.mxu0 0
        %1109 = vmatpush1.bf16.msra.mxu0 %v1085
        %1110 = vmatprep.subr.bf16.mxu0 0
        %1111 = vmatpush1.bf16.msra.mxu0 0
        %1112 = vmatprep.subr.bf16.mxu0 0
        %1113 = vmatpush1.bf16.msra.mxu0 0
        %1114 = vmatprep.subr.bf16.mxu0 0
        %1115 = vmatpush1.bf16.msra.mxu0 0
        %1116 = vmatprep.subr.bf16.mxu0 0
        %1117 = vmatpush1.bf16.msra.mxu0 0
        %1118 = vmatprep.subr.bf16.mxu0 0
        %1119 = vmatpush1.bf16.msra.mxu0 0
        %1120 = vmatprep.subr.bf16.mxu0 0
        %1121 = vmatpush1.bf16.msra.mxu0 0
        %1122 = vmatprep.subr.bf16.mxu0 0
        %1123 = vmatpush1.bf16.msra.mxu0 0
        %1124 = vmatprep.subr.bf16.mxu0 0
        %1125 = vmatpush1.bf16.msra.mxu0 0
        %1126 = vmatprep.mubr.bf16.mxu0 0
        %1127 = vmatmul.mubr.bf16.gmra.mrb[0].mxu0 %v775
        %v1128 = vpop.f32.mrb[0].mxu0
        %v1129 = vadd.f32 %v1044, %v1128
        %v1130 = vpop.f32.mrb[0].mxu0
        %v1131 = vpop.f32.mrb[0].mxu0
        %v1132 = vadd.f32 %v1044, %v1131
        %v1133 = vpop.f32.mrb[0].mxu0
        %1134 = vmatprep.mubr.bf16.mxu0 0
        %1135 = vmatmul.mubr.bf16.gmra.mrb[0].mxu0 %v776
        %v1136 = vpop.f32.mrb[0].mxu0
        %v1137 = vadd.f32 %v1044, %v1136
        %v1138 = vpop.f32.mrb[0].mxu0
        %v1139 = vpop.f32.mrb[0].mxu0
        %v1140 = vadd.f32 %v1044, %v1139
        %v1141 = vpop.f32.mrb[0].mxu0
        %1142 = vmatprep.mubr.bf16.mxu0 0
        %1143 = vmatmul.mubr.bf16.gmra.mrb[0].mxu0 %v777
        %v1144 = vpop.f32.mrb[0].mxu0
        %v1145 = vadd.f32 %v1044, %v1144
        %v1146 = vpop.f32.mrb[0].mxu0
        %v1147 = vpop.f32.mrb[0].mxu0
        %v1148 = vadd.f32 %v1044, %v1147
        %v1149 = vpop.f32.mrb[0].mxu0
        %1150 = vmatprep.mubr.bf16.mxu0 0
        %1151 = vmatmul.mubr.bf16.gmra.mrb[0].mxu0 %v778
        %v1152 = vpop.f32.mrb[0].mxu0
        %v1153 = vadd.f32 %v1044, %v1152
        %v1154 = vpop.f32.mrb[0].mxu0
        %v1155 = vpop.f32.mrb[0].mxu0
        %v1156 = vadd.f32 %v1044, %v1155
        %v1157 = vpop.f32.mrb[0].mxu0
        %1158 = vmatprep.mubr.bf16.mxu0 0
        %1159 = vmatmul.mubr.bf16.gmra.mrb[0].mxu0 %v779
        %v1160 = vpop.f32.mrb[0].mxu0
        %v1161 = vadd.f32 %v1044, %v1160
        %v1162 = vpop.f32.mrb[0].mxu0
        %v1163 = vpop.f32.mrb[0].mxu0
        %v1164 = vadd.f32 %v1044, %v1163
        %v1165 = vpop.f32.mrb[0].mxu0
        %1166 = vmatprep.mubr.bf16.mxu0 0
        %1167 = vmatmul.mubr.bf16.gmra.mrb[0].mxu0 %v780
        %v1168 = vpop.f32.mrb[0].mxu0
        %v1169 = vadd.f32 %v1044, %v1168
        %v1170 = vpop.f32.mrb[0].mxu0
        %v1171 = vpop.f32.mrb[0].mxu0
        %v1172 = vadd.f32 %v1044, %v1171
        %v1173 = vpop.f32.mrb[0].mxu0
        %1174 = vmatprep.mubr.bf16.mxu0 0
        %1175 = vmatmul.mubr.bf16.gmra.mrb[0].mxu0 %v781
        %v1176 = vpop.f32.mrb[0].mxu0
        %v1177 = vadd.f32 %v1044, %v1176
        %v1178 = vpop.f32.mrb[0].mxu0
        %v1179 = vpop.f32.mrb[0].mxu0
        %v1180 = vadd.f32 %v1044, %v1179
        %v1181 = vpop.f32.mrb[0].mxu0
        %1182 = vmatprep.mubr.bf16.mxu0 0
        %1183 = vmatmul.mubr.bf16.gmra.mrb[0].mxu0 %v782
        %v1184 = vpop.f32.mrb[0].mxu0
        %v1185 = vadd.f32 %v1044, %v1184
        %v1186 = vpop.f32.mrb[0].mxu0
        %v1187 = vpop.f32.mrb[0].mxu0
        %v1188 = vadd.f32 %v1044, %v1187
        %v1189 = vpop.f32.mrb[0].mxu0
        %1190 = vmatprep.mubr.bf16.mxu0 0
        %1191 = vmatmul.mubr.bf16.gmra.mrb[0].mxu0 %v783
        %v1192 = vpop.f32.mrb[0].mxu0
        %v1193 = vadd.f32 %v1044, %v1192
        %v1194 = vpop.f32.mrb[0].mxu0
        %v1195 = vpop.f32.mrb[0].mxu0
        %v1196 = vadd.f32 %v1044, %v1195
        %v1197 = vpop.f32.mrb[0].mxu0
        %1198 = vmatprep.mubr.bf16.mxu0 0
        %1199 = vmatmul.mubr.bf16.gmra.mrb[0].mxu0 %v784
        %v1200 = vpop.f32.mrb[0].mxu0
        %v1201 = vadd.f32 %v1044, %v1200
        %v1202 = vpop.f32.mrb[0].mxu0
        %v1203 = vpop.f32.mrb[0].mxu0
        %v1204 = vadd.f32 %v1044, %v1203
        %v1205 = vpop.f32.mrb[0].mxu0
        %1206 = vmatprep.mubr.bf16.mxu0 0
        %1207 = vmatmul.mubr.bf16.gmra.mrb[0].mxu0 %v785
        %v1208 = vpop.f32.mrb[0].mxu0
        %v1209 = vadd.f32 %v1044, %v1208
        %v1210 = vpop.f32.mrb[0].mxu0
        %v1211 = vpop.f32.mrb[0].mxu0
        %v1212 = vadd.f32 %v1044, %v1211
        %v1213 = vpop.f32.mrb[0].mxu0
        %1214 = vmatprep.mubr.bf16.mxu0 0
        %1215 = vmatmul.mubr.bf16.gmra.mrb[0].mxu0 %v786
        %v1216 = vpop.f32.mrb[0].mxu0
        %v1217 = vadd.f32 %v1044, %v1216
        %v1218 = vpop.f32.mrb[0].mxu0
        %v1219 = vpop.f32.mrb[0].mxu0
        %v1220 = vadd.f32 %v1044, %v1219
        %v1221 = vpop.f32.mrb[0].mxu0
        %1222 = vmatprep.mubr.bf16.mxu0 0
        %1223 = vmatmul.mubr.bf16.gmra.mrb[0].mxu0 %v787
        %v1224 = vpop.f32.mrb[0].mxu0
        %v1225 = vadd.f32 %v1044, %v1224
        %v1226 = vpop.f32.mrb[0].mxu0
        %v1227 = vpop.f32.mrb[0].mxu0
        %v1228 = vadd.f32 %v1044, %v1227
        %v1229 = vpop.f32.mrb[0].mxu0
        %1230 = vmatprep.mubr.bf16.mxu0 0
        %1231 = vmatmul.mubr.bf16.gmra.mrb[0].mxu0 %v788
        %v1232 = vpop.f32.mrb[0].mxu0
        %v1233 = vadd.f32 %v1044, %v1232
        %v1234 = vpop.f32.mrb[0].mxu0
        %v1235 = vpop.f32.mrb[0].mxu0
        %v1236 = vadd.f32 %v1044, %v1235
        %v1237 = vpop.f32.mrb[0].mxu0
        %1238 = vmatprep.mubr.bf16.mxu0 0
        %1239 = vmatmul.mubr.bf16.gmra.mrb[0].mxu0 %v789
        %v1240 = vpop.f32.mrb[0].mxu0
        %v1241 = vadd.f32 %v1044, %v1240
        %v1242 = vpop.f32.mrb[0].mxu0
        %v1243 = vpop.f32.mrb[0].mxu0
        %v1244 = vadd.f32 %v1044, %v1243
        %v1245 = vpop.f32.mrb[0].mxu0
        %1246 = vmatprep.mubr.bf16.mxu0 0
        %1247 = vmatmul.mubr.bf16.gmra.mrb[0].mxu0 %v790
        %v1248 = vpop.f32.mrb[0].mxu0
        %v1249 = vadd.f32 %v1044, %v1248
        %v1250 = vpop.f32.mrb[0].mxu0
        %v1251 = vpop.f32.mrb[0].mxu0
        %v1252 = vadd.f32 %v1044, %v1251
        %v1253 = vpop.f32.mrb[0].mxu0
        %1254 = vdwg.mxu0
        %1255 = vst [vmem:[%s371] sm:$0xff] %v897
        %1256 = vst [vmem:[%s371 + $0x8] sm:$0xff] %v900
        %1257 = vst [vmem:[%s371 + $0x10] sm:$0xff] %v905
        %1258 = vst [vmem:[%s371 + $0x18] sm:$0xff] %v908
        %1259 = vst [vmem:[%s371 + $0x20] sm:$0xff] %v913
        %1260 = vst [vmem:[%s371 + $0x28] sm:$0xff] %v916
        %1261 = vst [vmem:[%s371 + $0x30] sm:$0xff] %v921
        %1262 = vst [vmem:[%s371 + $0x38] sm:$0xff] %v924
        %1263 = vst [vmem:[%s371 + $0x40] sm:$0xff] %v929
        %1264 = vst [vmem:[%s371 + $0x48] sm:$0xff] %v932
        %1265 = vst [vmem:[%s371 + $0x50] sm:$0xff] %v937
        %1266 = vst [vmem:[%s371 + $0x58] sm:$0xff] %v940
        %1267 = vst [vmem:[%s371 + $0x60] sm:$0xff] %v945
        %1268 = vst [vmem:[%s371 + $0x68] sm:$0xff] %v948
        %1269 = vst [vmem:[%s371 + $0x70] sm:$0xff] %v953
        %1270 = vst [vmem:[%s371 + $0x78] sm:$0xff] %v956
        %1271 = vst [vmem:[%s371 + $0x80] sm:$0xff] %v961
        %1272 = vst [vmem:[%s371 + $0x88] sm:$0xff] %v964
        %1273 = vst [vmem:[%s371 + $0x90] sm:$0xff] %v969
        %1274 = vst [vmem:[%s371 + $0x98] sm:$0xff] %v972
        %1275 = vst [vmem:[%s371 + $0xa0] sm:$0xff] %v977
        %1276 = vst [vmem:[%s371 + $0xa8] sm:$0xff] %v980
        %1277 = vst [vmem:[%s371 + $0xb0] sm:$0xff] %v985
        %1278 = vst [vmem:[%s371 + $0xb8] sm:$0xff] %v988
        %1279 = vst [vmem:[%s371 + $0xc0] sm:$0xff] %v993
        %1280 = vst [vmem:[%s371 + $0xc8] sm:$0xff] %v996
        %1281 = vst [vmem:[%s371 + $0xd0] sm:$0xff] %v1001
        %1282 = vst [vmem:[%s371 + $0xd8] sm:$0xff] %v1004
        %1283 = vst [vmem:[%s371 + $0xe0] sm:$0xff] %v1009
        %1284 = vst [vmem:[%s371 + $0xe8] sm:$0xff] %v1012
        %1285 = vst [vmem:[%s371 + $0xf0] sm:$0xff] %v1017
        %1286 = vst [vmem:[%s371 + $0xf8] sm:$0xff] %v1020
        %v1287 = vmul.f32 %v1129, 0.5
        %v1288 = vmul.f32 %v1132, 0.5
        %v1289 = vmul.f32 %v1137, 0.5
        %v1290 = vmul.f32 %v1140, 0.5
        %v1291 = vmul.f32 %v1145, 0.5
        %v1292 = vmul.f32 %v1148, 0.5
        %v1293 = vmul.f32 %v1153, 0.5
        %v1294 = vmul.f32 %v1156, 0.5
        %v1295 = vmul.f32 %v1161, 0.5
        %v1296 = vmul.f32 %v1164, 0.5
        %v1297 = vmul.f32 %v1169, 0.5
        %v1298 = vmul.f32 %v1172, 0.5
        %v1299 = vmul.f32 %v1177, 0.5
        %v1300 = vmul.f32 %v1180, 0.5
        %v1301 = vmul.f32 %v1185, 0.5
        %v1302 = vmul.f32 %v1188, 0.5
        %v1303 = vmul.f32 %v1193, 0.5
        %v1304 = vmul.f32 %v1196, 0.5
        %v1305 = vmul.f32 %v1201, 0.5
        %v1306 = vmul.f32 %v1204, 0.5
        %v1307 = vmul.f32 %v1209, 0.5
        %v1308 = vmul.f32 %v1212, 0.5
        %v1309 = vmul.f32 %v1217, 0.5
        %v1310 = vmul.f32 %v1220, 0.5
        %v1311 = vmul.f32 %v1225, 0.5
        %v1312 = vmul.f32 %v1228, 0.5
        %v1313 = vmul.f32 %v1233, 0.5
        %v1314 = vmul.f32 %v1236, 0.5
        %v1315 = vmul.f32 %v1241, 0.5
        %v1316 = vmul.f32 %v1244, 0.5
        %v1317 = vmul.f32 %v1249, 0.5
        %v1318 = vmul.f32 %v1252, 0.5
        %v1319 = vmul.f32 %v1287, 1.442695
        %v1320 = vpow.pop %v1319
        %v1321 = vmul.f32 %v1288, 1.442695
        %v1322 = vpow.pop %v1321
        %v1323 = vmul.f32 %v1289, 1.442695
        %v1324 = vpow.pop %v1323
        %v1325 = vmul.f32 %v1290, 1.442695
        %v1326 = vpow.pop %v1325
        %v1327 = vmul.f32 %v1291, 1.442695
        %v1328 = vpow.pop %v1327
        %v1329 = vmul.f32 %v1292, 1.442695
        %v1330 = vpow.pop %v1329
        %v1331 = vmul.f32 %v1293, 1.442695
        %v1332 = vpow.pop %v1331
        %v1333 = vmul.f32 %v1294, 1.442695
        %v1334 = vpow.pop %v1333
        %v1335 = vmul.f32 %v1295, 1.442695
        %v1336 = vpow.pop %v1335
        %v1337 = vmul.f32 %v1296, 1.442695
        %v1338 = vpow.pop %v1337
        %v1339 = vmul.f32 %v1297, 1.442695
        %v1340 = vpow.pop %v1339
        %v1341 = vmul.f32 %v1298, 1.442695
        %v1342 = vpow.pop %v1341
        %v1343 = vmul.f32 %v1299, 1.442695
        %v1344 = vpow.pop %v1343
        %v1345 = vmul.f32 %v1300, 1.442695
        %v1346 = vpow.pop %v1345
        %v1347 = vmul.f32 %v1301, 1.442695
        %v1348 = vpow.pop %v1347
        %v1349 = vmul.f32 %v1302, 1.442695
        %v1350 = vpow.pop %v1349
        %v1351 = vmul.f32 %v1303, 1.442695
        %v1352 = vpow.pop %v1351
        %v1353 = vmul.f32 %v1304, 1.442695
        %v1354 = vpow.pop %v1353
        %v1355 = vmul.f32 %v1305, 1.442695
        %v1356 = vpow.pop %v1355
        %v1357 = vmul.f32 %v1306, 1.442695
        %v1358 = vpow.pop %v1357
        %v1359 = vmul.f32 %v1307, 1.442695
        %v1360 = vpow.pop %v1359
        %v1361 = vmul.f32 %v1308, 1.442695
        %v1362 = vpow.pop %v1361
        %v1363 = vmul.f32 %v1309, 1.442695
        %v1364 = vpow.pop %v1363
        %v1365 = vmul.f32 %v1310, 1.442695
        %v1366 = vpow.pop %v1365
        %v1367 = vmul.f32 %v1311, 1.442695
        %v1368 = vpow.pop %v1367
        %v1369 = vmul.f32 %v1312, 1.442695
        %v1370 = vpow.pop %v1369
        %v1371 = vmul.f32 %v1313, 1.442695
        %v1372 = vpow.pop %v1371
        %v1373 = vmul.f32 %v1314, 1.442695
        %v1374 = vpow.pop %v1373
        %v1375 = vmul.f32 %v1315, 1.442695
        %v1376 = vpow.pop %v1375
        %v1377 = vmul.f32 %v1316, 1.442695
        %v1378 = vpow.pop %v1377
        %v1379 = vmul.f32 %v1317, 1.442695
        %v1380 = vpow.pop %v1379
        %v1381 = vmul.f32 %v1318, 1.442695
        %v1382 = vpow.pop %v1381
        %1383 = vst [vmem:[%s378] sm:$0xff] %v1320
        %1384 = vst [vmem:[%s378 + $0x8] sm:$0xff] %v1322
        %1385 = vst [vmem:[%s378 + $0x10] sm:$0xff] %v1324
        %1386 = vst [vmem:[%s378 + $0x18] sm:$0xff] %v1326
        %1387 = vst [vmem:[%s378 + $0x20] sm:$0xff] %v1328
        %1388 = vst [vmem:[%s378 + $0x28] sm:$0xff] %v1330
        %1389 = vst [vmem:[%s378 + $0x30] sm:$0xff] %v1332
        %1390 = vst [vmem:[%s378 + $0x38] sm:$0xff] %v1334
        %1391 = vst [vmem:[%s378 + $0x40] sm:$0xff] %v1336
        %1392 = vst [vmem:[%s378 + $0x48] sm:$0xff] %v1338
        %1393 = vst [vmem:[%s378 + $0x50] sm:$0xff] %v1340
        %1394 = vst [vmem:[%s378 + $0x58] sm:$0xff] %v1342
        %1395 = vst [vmem:[%s378 + $0x60] sm:$0xff] %v1344
        %1396 = vst [vmem:[%s378 + $0x68] sm:$0xff] %v1346
        %1397 = vst [vmem:[%s378 + $0x70] sm:$0xff] %v1348
        %1398 = vst [vmem:[%s378 + $0x78] sm:$0xff] %v1350
        %1399 = vst [vmem:[%s378 + $0x80] sm:$0xff] %v1352
        %1400 = vst [vmem:[%s378 + $0x88] sm:$0xff] %v1354
        %1401 = vst [vmem:[%s378 + $0x90] sm:$0xff] %v1356
        %1402 = vst [vmem:[%s378 + $0x98] sm:$0xff] %v1358
        %1403 = vst [vmem:[%s378 + $0xa0] sm:$0xff] %v1360
        %1404 = vst [vmem:[%s378 + $0xa8] sm:$0xff] %v1362
        %1405 = vst [vmem:[%s378 + $0xb0] sm:$0xff] %v1364
        %1406 = vst [vmem:[%s378 + $0xb8] sm:$0xff] %v1366
        %1407 = vst [vmem:[%s378 + $0xc0] sm:$0xff] %v1368
        %1408 = vst [vmem:[%s378 + $0xc8] sm:$0xff] %v1370
        %1409 = vst [vmem:[%s378 + $0xd0] sm:$0xff] %v1372
        %1410 = vst [vmem:[%s378 + $0xd8] sm:$0xff] %v1374
        %1411 = vst [vmem:[%s378 + $0xe0] sm:$0xff] %v1376
        %1412 = vst [vmem:[%s378 + $0xe8] sm:$0xff] %v1378
        %1413 = vst [vmem:[%s378 + $0xf0] sm:$0xff] %v1380
        %1414 = vst [vmem:[%s378 + $0xf8] sm:$0xff] %v1382
        %s1415 = sand.u32 %s191, 1
        %s1416 = scalar_lea.sflag [#allocation4], %s1415
        %s1417 = sand.u32 %s191, 1
        %s1418 = smul.addr %s1417, 256
        %s1419 = scalar_lea.vmem [#allocation10], %s1418
        %s1420 = sand.u32 %s217, 1
        %s1421 = scalar_lea.sflag [#allocation12], %s1420
        %s1422 = sand.u32 %s217, 1
        %s1423 = smul.addr %s1422, 256
        %s1424 = scalar_lea.vmem [#allocation11], %s1423
        // Predicated region
        $region65: #{tpu_custom_call.1} parent=47 // pred_check
          %p1425 = pneg %p201
        $region66: #{tpu_custom_call.1} parent=47 // pred_check_branch
          %1427 = sbr.rel (%p1425) target = $region68
        $region67: #{tpu_custom_call.1} parent=47 // pred_region
          %s1428 = smul.u32 32, %s31
          %s1430 = ssub.s32 4096, 4096
          %1431 = vsyncadd %s1416, %s1430
          %s1432 = smul.addr %s1428, 128
          %s1433 = scalar_lea.hbm %s7, %s1432
          %s1434 = sshll.u32 %s1419, 4
          %s1435 = int_to_ptr.vmem [resolvable:$true] %s1434
          %1440 = dma.vmem_to_hbm [thread:$0]  %s1435, 4096, %s1433, %s1416, 128, 128, 8
        $region68: #{tpu_custom_call.1} parent=47 // pred_fallthru
          _
        // Predicated region
        $region69: #{tpu_custom_call.1} parent=47 // pred_check
          %p1441 = pneg %p227
        $region70: #{tpu_custom_call.1} parent=47 // pred_check_branch
          %1443 = sbr.rel (%p1441) target = $region72
        $region71: #{tpu_custom_call.1} parent=47 // pred_region
          %s1444 = smul.u32 32, %s31
          %s1446 = ssub.s32 4096, 4096
          %1447 = vsyncadd %s1421, %s1446
          %s1448 = smul.addr %s1444, 128
          %s1449 = scalar_lea.hbm %s8, %s1448
          %s1450 = sshll.u32 %s1424, 4
          %s1451 = int_to_ptr.vmem [resolvable:$true] %s1450
          %1456 = dma.vmem_to_hbm [thread:$0]  %s1451, 4096, %s1449, %s1421, 128, 128, 8
        $region72: #{tpu_custom_call.1} parent=47 // pred_fallthru
          _
      $region48: #{tpu_custom_call.1} parent=5 // pred_fallthru
        _
      %p1457 = scmp.le.s32.totalorder 2, %s26
      // Predicated region
      $region73: #{tpu_custom_call.1} parent=5 // pred_check
        %p1458 = pneg %p1457
      $region74: #{tpu_custom_call.1} parent=5 // pred_check_branch
        %1460 = sbr.rel (%p1458) target = $region76
      $region75: #{tpu_custom_call.1} parent=5 // pred_region
        %s1461 = ssub.s32 %s26, 2
        // Predicated region
        $region77: #{tpu_custom_call.1} parent=75 // pred_check
          %p1462 = pneg %p207
        $region78: #{tpu_custom_call.1} parent=75 // pred_check_branch
          %1464 = sbr.rel (%p1462) target = $region80
        $region79: #{tpu_custom_call.1} parent=75 // pred_region
          %s1465 = sand.u32 %s192, 1
          %s1466 = scalar_lea.sflag [#allocation4], %s1465
          %s1467 = sand.u32 %s192, 1
          %s1468 = smul.addr %s1467, 256
          %s1469 = scalar_lea.vmem [#allocation10], %s1468
          %1470 = dma.done %s1466, 4096
        $region80: #{tpu_custom_call.1} parent=75 // pred_fallthru
          _
        // Predicated region
        $region81: #{tpu_custom_call.1} parent=75 // pred_check
          %p1471 = pneg %p233
        $region82: #{tpu_custom_call.1} parent=75 // pred_check_branch
          %1473 = sbr.rel (%p1471) target = $region84
        $region83: #{tpu_custom_call.1} parent=75 // pred_region
          %s1474 = sand.u32 %s218, 1
          %s1475 = scalar_lea.sflag [#allocation12], %s1474
          %s1476 = sand.u32 %s218, 1
          %s1477 = smul.addr %s1476, 256
          %s1478 = scalar_lea.vmem [#allocation11], %s1477
          %1479 = dma.done %s1475, 4096
        $region84: #{tpu_custom_call.1} parent=75 // pred_fallthru
          _
      $region76: #{tpu_custom_call.1} parent=5 // pred_fallthru
        _
    $region6: #{tpu_custom_call.1} parent=1 // loop_footer
      %s30 = sadd.s32 1, %s26
    $region7: #{tpu_custom_call.1} parent=1 // loop_footer_branch
      %25 = sbr.rel target = $region3
    $region8: #{tpu_custom_call.1} parent=1 // loop_exit
      _
    %1480 = vsyncpa [#allocation3], 1
    %s1481 = scalar_lea.sflag [#allocation3], 1
    %1482 = vsyncpa %s1481, 1
    %1483 = vsyncpa [#allocation6], 1
    %1484 = vsyncpa [#allocation9], 1
    %1485 = vsyncpa [#allocation4], 1
    %s1486 = scalar_lea.sflag [#allocation4], 1
    %1487 = vsyncpa %s1486, 1
    %1488 = vsyncpa [#allocation12], 1
    %s1489 = scalar_lea.sflag [#allocation12], 1
    %1490 = vsyncpa %s1489, 1

</llo_original>
